<compile_context>
chip_gen: v7x
topology: tpu7x:2x2x1
jax: 0.10.0
libtpu: 0.0.40
codegen_flags: <defaults>
</compile_context>

<pallas_src>
import functools
import math

import jax
import jax.numpy as jnp
from jax import lax
from jax.experimental import pallas as pl
from jax.experimental.pallas import tpu as pltpu


def _gelu(x):
    # tanh-approx GELU (== jax.nn.gelu(approximate=True)); tanh runs on the EUP,
    # freeing VPU VALU slots versus the erf polynomial.
    # TODO(synk): switch back to an erf-based GELU if bit-closer parity with
    # nn.GELU() (exact erf) is required; difference is ~1e-3 max abs.
    c = 0.7978845608028654  # sqrt(2/pi)
    return 0.5 * x * (1.0 + jnp.tanh(c * (x + 0.044715 * (x * x * x))))


def block_gen_kernel(x_ref, xcls_ref, mask_ref,
                     w0_ref, wq_ref, wkv_ref, wo_ref,
                     wclsh_ref, w2h_ref, w2e_ref, w1_ref,
                     sel_ref, vec_ref,
                     xout_ref, xclsout_ref,
                     *, num_heads):
    f32 = jnp.float32
    bf16 = jnp.bfloat16

    TB, S, E = x_ref.shape          # batch-block, sequence, embed
    H = wq_ref.shape[0]             # hidden
    hd = H // num_heads
    rows = TB * S

    x3d = x_ref[...]                          # (TB, S, E) f32
    x2d = x3d.reshape(rows, E)                # leading-dim merge only (layout-safe)
    xc = xcls_ref[...].reshape(TB, E)         # (TB, 1, E) -> (TB, E)
    m = mask_ref[...]                         # (TB, S, 1); 1.0 = padded key

    # Packed 1-row parameters (single input tensor, sliced at lane offset 0).
    vec = vec_ref[...]                        # (11, max(H, E)) f32
    b0, gamma, beta = vec[0:1, :H], vec[1:2, :H], vec[2:3, :H]
    bq, bk, bv, bo = vec[3:4, :H], vec[4:5, :H], vec[5:6, :H], vec[6:7, :H]
    bcls, wcls1 = vec[7:8, :E], vec[8:9, :E]
    b2, b1 = vec[9:10, :E], vec[10:11, :E]

    # ---- fc0 + GELU on the sequence; fc0 + LayerNorm + GELU on the cls token ----
    w0 = w0_ref[...]
    h = _gelu(jnp.dot(x2d.astype(bf16), w0, preferred_element_type=f32) + b0)      # (rows, H)
    hc = jnp.dot(xc.astype(bf16), w0, preferred_element_type=f32) + b0             # (TB, H)
    mu = jnp.mean(hc, axis=-1, keepdims=True)
    var = jnp.mean((hc - mu) * (hc - mu), axis=-1, keepdims=True)
    hc = _gelu((hc - mu) * lax.rsqrt(var + 1e-5) * gamma + beta)

    # ---- fused K/V projection (one MXU op) + tiny Q projection from the cls token ----
    kv = jnp.dot(h.astype(bf16), wkv_ref[...], preferred_element_type=f32)         # (rows, 2H)
    k = kv[:, :H] + bk
    v = kv[:, H:] + bv
    q = jnp.dot(hc.astype(bf16), wq_ref[...], preferred_element_type=f32) + bq     # (TB, H)
    q = q * (1.0 / math.sqrt(hd))

    # ---- single-query multi-head attention, vectorized over heads & batch block ----
    # sel[i, j] = 1 iff feature i belongs to head j. Head-wise score reduction and
    # probability expansion are two tiny selector matmuls (no per-head loop / concat).
    sel = sel_ref[...]                                                              # (H, nh) f32
    k3 = k.reshape(TB, S, H)
    v3 = v.reshape(TB, S, H)
    kq = (k3 * q[:, None, :]).reshape(rows, H)
    scores = jnp.dot(kq, sel, preferred_element_type=f32).reshape(TB, S, num_heads)
    scores = jnp.where(m > 0.5, -1e30, scores)          # key_padding_mask (True = pad)
    # NOTE: a fully-padded row yields a uniform softmax here (PyTorch would give NaN).
    smax = jnp.max(scores, axis=1, keepdims=True)
    p = jnp.exp(scores - smax)
    denom = jnp.sum(p, axis=1, keepdims=True)
    p = p * pl.reciprocal(denom, approx=True)           # EUP vrcp, frees VPU slots
    p_full = lax.dot_general(p.reshape(rows, num_heads), sel,
                             (((1,), (1,)), ((), ())),
                             preferred_element_type=f32).reshape(TB, S, H)
    attn = jnp.sum(p_full * v3, axis=1)                                             # (TB, H)
    attn = jnp.dot(attn.astype(bf16), wo_ref[...], preferred_element_type=f32) + bo

    # ---- fc1_cls(cat(attn, mask.sum()/70)) as a split matmul (avoids the H+1 concat) ----
    msum = jnp.sum(m, axis=1) * (1.0 / 70.0)                                        # (TB, 1)
    xc_out = (jnp.dot(attn.astype(bf16), wclsh_ref[...], preferred_element_type=f32)
              + msum * wcls1 + bcls)                                                # (TB, E)

    # ---- fc2(cat(h, x_cls_broadcast)) as a split matmul, then fc1 + residual ----
    x2 = (jnp.dot(h.astype(bf16), w2h_ref[...], preferred_element_type=f32).reshape(TB, S, E)
          + jnp.dot(xc_out.astype(bf16), w2e_ref[...], preferred_element_type=f32)[:, None, :]
          + b2)
    x2 = _gelu(x2).reshape(rows, E)
    xnew = _gelu(jnp.dot(x2.astype(bf16), w1_ref[...], preferred_element_type=f32)
                 + b1 + x2d)                                                        # (rows, E)

    xclsout_ref[...] = xc_out.reshape(TB, 1, E)

    # Lane-dense store: pad the feature dim up to the (128-multiple) output width so the
    # writeback is full-width vector stores instead of masked partial stores.
    e_pad = xout_ref.shape[-1]
    if e_pad != E:
        xnew = jnp.concatenate([xnew, jnp.zeros((rows, e_pad - E), f32)], axis=-1)
    xout_ref[...] = xnew.reshape(TB, S, e_pad)


def _pick_block_b(B, S, max_rows=256):
    """Largest batch-block TB that (a) divides B, (b) keeps TB*S rows modest,
    (c) keeps the grid length >= 2 when B >= 2 (so v7x's two TensorCores both get
    work), and (d) keeps the flattened-row reshapes tile-aligned (S % 8 == 0) when
    TB > 1."""
    best = 1
    for tb in range(1, B + 1):
        if B % tb != 0:
            continue
        if tb > 1 and S % 8 != 0:
            continue
        if tb * S > max_rows:
            continue
        if B >= 2 and (B // tb) < 2:
            continue
        best = tb
    return best


def block_gen_forward(x, x_cls, mask, params, num_heads, block_b=None):
    """BlockGen forward. params is a dict of pre-transposed weights (see init_params).
    Returns (x, x_cls, w) with w=None (the weight=False path of the reference)."""
    B, S, E = x.shape
    H = params["w0"].shape[1]
    assert H % num_heads == 0
    TB = block_b if block_b is not None else _pick_block_b(B, S)
    assert B % TB == 0
    grid_b = B // TB
    E_pad = -(-E // 128) * 128          # lane-dense output width for x

    f32, bf16 = jnp.float32, jnp.bfloat16

    # ---- pack / fuse parameters: fused KV weight, packed 1-row params, bf16 weights ----
    W = max(H, E)

    def row(v, width=W):
        v = v.reshape(-1).astype(f32)
        return jnp.pad(v, (0, width - v.shape[0]))

    vecs = jnp.stack([
        row(params["b0"]), row(params["ln_gamma"]), row(params["ln_beta"]),
        row(params["bq"]), row(params["bk"]), row(params["bv"]), row(params["bo"]),
        row(params["bcls"]), row(params["wcls"][H]),
        row(params["b2"]), row(params["b1"]),
    ])                                                            # (11, max(H,E)) f32

    wkv = jnp.concatenate([params["wk"], params["wv"]], axis=1)    # (H, 2H)
    weights = [params["w0"], params["wq"], wkv, params["wo"],
               params["wcls"][:H], params["w2"][:H], params["w2"][H:], params["w1"]]
    weights = [w.astype(bf16) for w in weights]   # bf16 weights, f32 accumulation in-kernel

    hd = H // num_heads
    sel = jnp.repeat(jnp.eye(num_heads, dtype=f32), hd, axis=0)    # (H, nh) head selector

    x = x.astype(f32)
    xcls3 = x_cls.reshape(B, 1, E).astype(f32)
    mask3 = mask.reshape(B, S, 1).astype(f32)     # 1.0 = padded key

    kernel = functools.partial(block_gen_kernel, num_heads=num_heads)

    data_specs = [
        pl.BlockSpec((TB, S, E), lambda b: (b, 0, 0)),
        pl.BlockSpec((TB, 1, E), lambda b: (b, 0, 0)),
        pl.BlockSpec((TB, S, 1), lambda b: (b, 0, 0)),
    ]
    param_arrays = weights + [sel, vecs]
    param_specs = [pl.BlockSpec(p.shape, lambda b: (0, 0)) for p in param_arrays]

    out_shapes = (jax.ShapeDtypeStruct((B, S, E_pad), f32),
                  jax.ShapeDtypeStruct((B, 1, E), f32))
    out_specs = (pl.BlockSpec((TB, S, E_pad), lambda b: (b, 0, 0)),
                 pl.BlockSpec((TB, 1, E), lambda b: (b, 0, 0)))

    # Advisory cost estimate so XLA schedules surrounding ops sensibly.
    flops = 2 * B * (S * E * H + E * H + S * H * 2 * H + H * H
                     + S * H * num_heads + S * num_heads * H + H * H + H * E
                     + S * H * E + E * E + S * E * E)
    transcendentals = B * (S * H + H + 2 * S * E + S * num_heads + num_heads + 1)
    param_bytes = sum(int(p.size) * p.dtype.itemsize for p in param_arrays)
    bytes_accessed = int(4 * (2 * B * S * E + B * S * (E_pad - E) + 2 * B * E + B * S)
                         + grid_b * param_bytes)
    cost = pl.CostEstimate(flops=int(flops), transcendentals=int(transcendentals),
                           bytes_accessed=bytes_accessed)

    # Explicit VMEM budget (v7x has 64 MiB physical / 32 MiB default scoped).
    block_bytes = 4 * (TB * S * E + TB * E + TB * S + TB * S * E_pad + TB * E) + param_bytes
    vmem_limit = int(min(64 * 2**20, max(32 * 2**20, 8 * block_bytes)))

    x_out, xcls_out = pl.pallas_call(
        kernel,
        out_shape=out_shapes,
        grid=(grid_b,),
        in_specs=data_specs + param_specs,
        out_specs=out_specs,
        compiler_params=pltpu.CompilerParams(
            dimension_semantics=("parallel",),
            vmem_limit_bytes=vmem_limit),
        cost_estimate=cost,
    )(x, xcls3, mask3, *param_arrays)

    # TODO(synk): weight=True path (returning per-head attention weights) not emitted;
    # default forward path (weight=False) returns w=None, matching the reference.
    return x_out[:, :, :E], xcls_out, None


def init_params(key, embed_dim, hidden):
    """Deterministic synthetic parameters, PyTorch-Linear-style uniform(+-1/sqrt(fan_in)).
    Linear weights are stored pre-transposed as (in_features, out_features)."""
    def lin(k, fan_in, fan_out):
        bound = 1.0 / math.sqrt(fan_in)
        kw, kb = jax.random.split(k)
        w = jax.random.uniform(kw, (fan_in, fan_out), jnp.float32, -bound, bound)
        b = jax.random.uniform(kb, (fan_out,), jnp.float32, -bound, bound)
        return w, b

    ks = jax.random.split(key, 8)
    p = {}
    p["w0"], p["b0"] = lin(ks[0], embed_dim, hidden)               # fc0
    p["ln_gamma"] = jnp.ones((hidden,), jnp.float32)               # ln
    p["ln_beta"] = jnp.zeros((hidden,), jnp.float32)
    p["wq"], p["bq"] = lin(ks[1], hidden, hidden)                  # attn in_proj (q)
    p["wk"], p["bk"] = lin(ks[2], hidden, hidden)                  # attn in_proj (k)
    p["wv"], p["bv"] = lin(ks[3], hidden, hidden)                  # attn in_proj (v)
    p["wo"], p["bo"] = lin(ks[4], hidden, hidden)                  # attn out_proj
    p["wcls"], p["bcls"] = lin(ks[5], hidden + 1, embed_dim)       # fc1_cls (last row = mask col)
    p["w2"], p["b2"] = lin(ks[6], hidden + embed_dim, embed_dim)   # fc2
    p["w1"], p["b1"] = lin(ks[7], embed_dim, embed_dim)            # fc1
    return p


if __name__ == "__main__":
    B, S, E, H, NUM_HEADS = 2, 8, 16, 32, 4

    key = jax.random.PRNGKey(0)
    k_x, k_cls, k_p = jax.random.split(key, 3)
    x = jax.random.normal(k_x, (B, S, E), jnp.float32)
    x_cls = jax.random.normal(k_cls, (B, 1, E), jnp.float32)
    # key_padding_mask: 1.0 = padded key; batch 0 has 3 padded keys, batch 1 none.
    lens = jnp.array([5, 8], dtype=jnp.int32)
    mask = (jnp.arange(S)[None, :] >= lens[:, None]).astype(jnp.float32)

    params = init_params(k_p, E, H)

    fwd = jax.jit(functools.partial(block_gen_forward, num_heads=NUM_HEADS))
    x_out, xcls_out, w = fwd(x, x_cls, mask, params)
    jax.block_until_ready((x_out, xcls_out))

    assert x_out.shape == (B, S, E) and xcls_out.shape == (B, 1, E)
    assert bool(jnp.all(jnp.isfinite(x_out))) and bool(jnp.all(jnp.isfinite(xcls_out)))
    print("KERNEL_OK")
</pallas_src>

<mosaic_0001>
module attributes {stable_mosaic.version = 11 : i64} {
  func.func @block_gen_kernel(%arg0: i32, %arg1: memref<1x8x16xf32, #tpu.memory_space<vmem>>, %arg2: memref<1x1x16xf32, #tpu.memory_space<vmem>>, %arg3: memref<1x8x1xf32, #tpu.memory_space<vmem>>, %arg4: memref<16x32xbf16, #tpu.memory_space<vmem>>, %arg5: memref<32x32xbf16, #tpu.memory_space<vmem>>, %arg6: memref<32x64xbf16, #tpu.memory_space<vmem>>, %arg7: memref<32x32xbf16, #tpu.memory_space<vmem>>, %arg8: memref<32x16xbf16, #tpu.memory_space<vmem>>, %arg9: memref<32x16xbf16, #tpu.memory_space<vmem>>, %arg10: memref<16x16xbf16, #tpu.memory_space<vmem>>, %arg11: memref<16x16xbf16, #tpu.memory_space<vmem>>, %arg12: memref<32x4xf32, #tpu.memory_space<vmem>>, %arg13: memref<11x32xf32, #tpu.memory_space<vmem>>, %arg14: memref<1x8x128xf32, #tpu.memory_space<vmem>>, %arg15: memref<1x1x16xf32, #tpu.memory_space<vmem>>) attributes {dimension_semantics = [#tpu.dimension_semantics<parallel>], iteration_bounds = array<i64: 2>, scalar_prefetch = 0 : i64, scratch_operands = 0 : i64, tpu.core_type = #tpu.core_type<tc>, window_params = [{transform_indices = @transform_0, window_bounds = array<i64: 1, 8, 16>}, {transform_indices = @transform_1, window_bounds = array<i64: 1, 1, 16>}, {transform_indices = @transform_2, window_bounds = array<i64: 1, 8, 1>}, {pipeline_mode = #tpu.pipeline_mode<synchronous>, transform_indices = @transform_3, window_bounds = array<i64: 16, 32>}, {pipeline_mode = #tpu.pipeline_mode<synchronous>, transform_indices = @transform_4, window_bounds = array<i64: 32, 32>}, {pipeline_mode = #tpu.pipeline_mode<synchronous>, transform_indices = @transform_5, window_bounds = array<i64: 32, 64>}, {pipeline_mode = #tpu.pipeline_mode<synchronous>, transform_indices = @transform_6, window_bounds = array<i64: 32, 32>}, {pipeline_mode = #tpu.pipeline_mode<synchronous>, transform_indices = @transform_7, window_bounds = array<i64: 32, 16>}, {pipeline_mode = #tpu.pipeline_mode<synchronous>, transform_indices = @transform_8, window_bounds = array<i64: 32, 16>}, {pipeline_mode = #tpu.pipeline_mode<synchronous>, transform_indices = @transform_9, window_bounds = array<i64: 16, 16>}, {pipeline_mode = #tpu.pipeline_mode<synchronous>, transform_indices = @transform_10, window_bounds = array<i64: 16, 16>}, {pipeline_mode = #tpu.pipeline_mode<synchronous>, transform_indices = @transform_11, window_bounds = array<i64: 32, 4>}, {pipeline_mode = #tpu.pipeline_mode<synchronous>, transform_indices = @transform_12, window_bounds = array<i64: 11, 32>}, {transform_indices = @transform_13, window_bounds = array<i64: 1, 8, 128>}, {transform_indices = @transform_14, window_bounds = array<i64: 1, 1, 16>}]} {
    %c0 = arith.constant 0 : index
    %c0_0 = arith.constant 0 : index
    %c0_1 = arith.constant 0 : index
    %0 = vector.load %arg1[%c0, %c0_0, %c0_1] : memref<1x8x16xf32, #tpu.memory_space<vmem>>, vector<1x8x16xf32>
    %1 = vector.shape_cast %0 : vector<1x8x16xf32> to vector<8x16xf32>
    %c0_2 = arith.constant 0 : index
    %c0_3 = arith.constant 0 : index
    %c0_4 = arith.constant 0 : index
    %2 = vector.load %arg2[%c0_2, %c0_3, %c0_4] : memref<1x1x16xf32, #tpu.memory_space<vmem>>, vector<1x1x16xf32>
    %3 = vector.shape_cast %2 : vector<1x1x16xf32> to vector<1x16xf32>
    %c0_5 = arith.constant 0 : index
    %c0_6 = arith.constant 0 : index
    %c0_7 = arith.constant 0 : index
    %4 = vector.load %arg3[%c0_5, %c0_6, %c0_7] : memref<1x8x1xf32, #tpu.memory_space<vmem>>, vector<1x8x1xf32>
    %c0_8 = arith.constant 0 : index
    %c0_9 = arith.constant 0 : index
    %5 = vector.load %arg13[%c0_8, %c0_9] : memref<11x32xf32, #tpu.memory_space<vmem>>, vector<11x32xf32>
    %6 = vector.extract_strided_slice %5 {offsets = [0, 0], sizes = [1, 32], strides = [1, 1]} : vector<11x32xf32> to vector<1x32xf32>
    %7 = vector.extract_strided_slice %5 {offsets = [1, 0], sizes = [1, 32], strides = [1, 1]} : vector<11x32xf32> to vector<1x32xf32>
    %8 = vector.extract_strided_slice %5 {offsets = [2, 0], sizes = [1, 32], strides = [1, 1]} : vector<11x32xf32> to vector<1x32xf32>
    %9 = vector.extract_strided_slice %5 {offsets = [3, 0], sizes = [1, 32], strides = [1, 1]} : vector<11x32xf32> to vector<1x32xf32>
    %10 = vector.extract_strided_slice %5 {offsets = [4, 0], sizes = [1, 32], strides = [1, 1]} : vector<11x32xf32> to vector<1x32xf32>
    %11 = vector.extract_strided_slice %5 {offsets = [5, 0], sizes = [1, 32], strides = [1, 1]} : vector<11x32xf32> to vector<1x32xf32>
    %12 = vector.extract_strided_slice %5 {offsets = [6, 0], sizes = [1, 32], strides = [1, 1]} : vector<11x32xf32> to vector<1x32xf32>
    %13 = vector.extract_strided_slice %5 {offsets = [7, 0], sizes = [1, 16], strides = [1, 1]} : vector<11x32xf32> to vector<1x16xf32>
    %14 = vector.extract_strided_slice %5 {offsets = [8, 0], sizes = [1, 16], strides = [1, 1]} : vector<11x32xf32> to vector<1x16xf32>
    %15 = vector.extract_strided_slice %5 {offsets = [9, 0], sizes = [1, 16], strides = [1, 1]} : vector<11x32xf32> to vector<1x16xf32>
    %16 = vector.extract_strided_slice %5 {offsets = [10, 0], sizes = [1, 16], strides = [1, 1]} : vector<11x32xf32> to vector<1x16xf32>
    %c0_10 = arith.constant 0 : index
    %c0_11 = arith.constant 0 : index
    %17 = vector.load %arg4[%c0_10, %c0_11] : memref<16x32xbf16, #tpu.memory_space<vmem>>, vector<16x32xbf16>
    %18 = arith.truncf %1 : vector<8x16xf32> to vector<8x16xbf16>
    %cst = arith.constant dense<0.000000e+00> : vector<8x32xf32>
    %19 = tpu.matmul %18, %17, %cst {dimension_numbers = #tpu.dot_dimension_numbers<[1], [0], [0], [1], [0, 0, 1, 1], [], []>} : vector<8x16xbf16>, vector<16x32xbf16>, vector<8x32xf32> -> vector<8x32xf32>
    %20 = vector.broadcast %6 : vector<1x32xf32> to vector<8x32xf32>
    %21 = arith.addf %19, %20 : vector<8x32xf32>
    %cst_12 = arith.constant 5.000000e-01 : f32
    %22 = vector.broadcast %cst_12 : f32 to vector<8x32xf32>
    %23 = arith.mulf %22, %21 : vector<8x32xf32>
    %24 = arith.mulf %21, %21 : vector<8x32xf32>
    %25 = arith.mulf %24, %21 : vector<8x32xf32>
    %cst_13 = arith.constant 4.471500e-02 : f32
    %26 = vector.broadcast %cst_13 : f32 to vector<8x32xf32>
    %27 = arith.mulf %26, %25 : vector<8x32xf32>
    %28 = arith.addf %21, %27 : vector<8x32xf32>
    %cst_14 = arith.constant 0.797884583 : f32
    %29 = vector.broadcast %cst_14 : f32 to vector<8x32xf32>
    %30 = arith.mulf %29, %28 : vector<8x32xf32>
    %31 = math.tanh %30 : vector<8x32xf32>
    %cst_15 = arith.constant 1.000000e+00 : f32
    %32 = vector.broadcast %cst_15 : f32 to vector<8x32xf32>
    %33 = arith.addf %32, %31 : vector<8x32xf32>
    %34 = arith.mulf %23, %33 : vector<8x32xf32>
    %35 = arith.truncf %3 : vector<1x16xf32> to vector<1x16xbf16>
    %cst_16 = arith.constant dense<0.000000e+00> : vector<1x32xf32>
    %36 = tpu.matmul %35, %17, %cst_16 {dimension_numbers = #tpu.dot_dimension_numbers<[1], [0], [0], [1], [0, 0, 1, 1], [], []>} : vector<1x16xbf16>, vector<16x32xbf16>, vector<1x32xf32> -> vector<1x32xf32>
    %37 = arith.addf %36, %6 : vector<1x32xf32>
    %cst_17 = arith.constant dense<0.000000e+00> : vector<1xf32>
    %38 = vector.multi_reduction <add>, %37, %cst_17 [1] : vector<1x32xf32> to vector<1xf32>
    %39 = vector.shape_cast %38 : vector<1xf32> to vector<1x1xf32>
    %cst_18 = arith.constant 3.200000e+01 : f32
    %40 = vector.broadcast %cst_18 : f32 to vector<1x1xf32>
    %41 = arith.divf %39, %40 : vector<1x1xf32>
    %42 = vector.broadcast %41 : vector<1x1xf32> to vector<1x32xf32>
    %43 = arith.subf %37, %42 : vector<1x32xf32>
    %44 = vector.broadcast %41 : vector<1x1xf32> to vector<1x32xf32>
    %45 = arith.subf %37, %44 : vector<1x32xf32>
    %46 = arith.mulf %43, %45 : vector<1x32xf32>
    %cst_19 = arith.constant dense<0.000000e+00> : vector<1xf32>
    %47 = vector.multi_reduction <add>, %46, %cst_19 [1] : vector<1x32xf32> to vector<1xf32>
    %48 = vector.shape_cast %47 : vector<1xf32> to vector<1x1xf32>
    %cst_20 = arith.constant 3.200000e+01 : f32
    %49 = vector.broadcast %cst_20 : f32 to vector<1x1xf32>
    %50 = arith.divf %48, %49 : vector<1x1xf32>
    %51 = vector.broadcast %41 : vector<1x1xf32> to vector<1x32xf32>
    %52 = arith.subf %37, %51 : vector<1x32xf32>
    %cst_21 = arith.constant 9.99999974E-6 : f32
    %53 = vector.broadcast %cst_21 : f32 to vector<1x1xf32>
    %54 = arith.addf %50, %53 : vector<1x1xf32>
    %55 = math.rsqrt %54 : vector<1x1xf32>
    %56 = vector.broadcast %55 : vector<1x1xf32> to vector<1x32xf32>
    %57 = arith.mulf %52, %56 : vector<1x32xf32>
    %58 = arith.mulf %57, %7 : vector<1x32xf32>
    %59 = arith.addf %58, %8 : vector<1x32xf32>
    %cst_22 = arith.constant 5.000000e-01 : f32
    %60 = vector.broadcast %cst_22 : f32 to vector<1x32xf32>
    %61 = arith.mulf %60, %59 : vector<1x32xf32>
    %62 = arith.mulf %59, %59 : vector<1x32xf32>
    %63 = arith.mulf %62, %59 : vector<1x32xf32>
    %cst_23 = arith.constant 4.471500e-02 : f32
    %64 = vector.broadcast %cst_23 : f32 to vector<1x32xf32>
    %65 = arith.mulf %64, %63 : vector<1x32xf32>
    %66 = arith.addf %59, %65 : vector<1x32xf32>
    %cst_24 = arith.constant 0.797884583 : f32
    %67 = vector.broadcast %cst_24 : f32 to vector<1x32xf32>
    %68 = arith.mulf %67, %66 : vector<1x32xf32>
    %69 = math.tanh %68 : vector<1x32xf32>
    %cst_25 = arith.constant 1.000000e+00 : f32
    %70 = vector.broadcast %cst_25 : f32 to vector<1x32xf32>
    %71 = arith.addf %70, %69 : vector<1x32xf32>
    %72 = arith.mulf %61, %71 : vector<1x32xf32>
    %73 = arith.truncf %34 : vector<8x32xf32> to vector<8x32xbf16>
    %c0_26 = arith.constant 0 : index
    %c0_27 = arith.constant 0 : index
    %74 = vector.load %arg6[%c0_26, %c0_27] : memref<32x64xbf16, #tpu.memory_space<vmem>>, vector<32x64xbf16>
    %cst_28 = arith.constant dense<0.000000e+00> : vector<8x64xf32>
    %75 = tpu.matmul %73, %74, %cst_28 {dimension_numbers = #tpu.dot_dimension_numbers<[1], [0], [0], [1], [0, 0, 1, 1], [], []>} : vector<8x32xbf16>, vector<32x64xbf16>, vector<8x64xf32> -> vector<8x64xf32>
    %76 = vector.extract_strided_slice %75 {offsets = [0, 0], sizes = [8, 32], strides = [1, 1]} : vector<8x64xf32> to vector<8x32xf32>
    %77 = vector.broadcast %10 : vector<1x32xf32> to vector<8x32xf32>
    %78 = arith.addf %76, %77 : vector<8x32xf32>
    %79 = vector.extract_strided_slice %75 {offsets = [0, 32], sizes = [8, 32], strides = [1, 1]} : vector<8x64xf32> to vector<8x32xf32>
    %80 = vector.broadcast %11 : vector<1x32xf32> to vector<8x32xf32>
    %81 = arith.addf %79, %80 : vector<8x32xf32>
    %82 = arith.truncf %72 : vector<1x32xf32> to vector<1x32xbf16>
    %c0_29 = arith.constant 0 : index
    %c0_30 = arith.constant 0 : index
    %83 = vector.load %arg5[%c0_29, %c0_30] : memref<32x32xbf16, #tpu.memory_space<vmem>>, vector<32x32xbf16>
    %cst_31 = arith.constant dense<0.000000e+00> : vector<1x32xf32>
    %84 = tpu.matmul %82, %83, %cst_31 {dimension_numbers = #tpu.dot_dimension_numbers<[1], [0], [0], [1], [0, 0, 1, 1], [], []>} : vector<1x32xbf16>, vector<32x32xbf16>, vector<1x32xf32> -> vector<1x32xf32>
    %85 = arith.addf %84, %9 : vector<1x32xf32>
    %cst_32 = arith.constant 0.353553385 : f32
    %86 = vector.broadcast %cst_32 : f32 to vector<1x32xf32>
    %87 = arith.mulf %85, %86 : vector<1x32xf32>
    %c0_33 = arith.constant 0 : index
    %c0_34 = arith.constant 0 : index
    %88 = vector.load %arg12[%c0_33, %c0_34] : memref<32x4xf32, #tpu.memory_space<vmem>>, vector<32x4xf32>
    %89 = vector.shape_cast %78 : vector<8x32xf32> to vector<1x8x32xf32>
    %90 = vector.shape_cast %81 : vector<8x32xf32> to vector<1x8x32xf32>
    %91 = vector.shape_cast %87 : vector<1x32xf32> to vector<1x1x32xf32>
    %92 = vector.broadcast %91 : vector<1x1x32xf32> to vector<1x8x32xf32>
    %93 = arith.mulf %89, %92 : vector<1x8x32xf32>
    %94 = vector.shape_cast %93 : vector<1x8x32xf32> to vector<8x32xf32>
    %cst_35 = arith.constant dense<0.000000e+00> : vector<8x4xf32>
    %95 = tpu.matmul %94, %88, %cst_35 {dimension_numbers = #tpu.dot_dimension_numbers<[1], [0], [0], [1], [0, 0, 1, 1], [], []>} : vector<8x32xf32>, vector<32x4xf32>, vector<8x4xf32> -> vector<8x4xf32>
    %96 = vector.shape_cast %95 : vector<8x4xf32> to vector<1x8x4xf32>
    %cst_36 = arith.constant 5.000000e-01 : f32
    %97 = vector.broadcast %cst_36 : f32 to vector<1x8x1xf32>
    %98 = arith.cmpf ogt, %4, %97 : vector<1x8x1xf32>
    %cst_37 = arith.constant -1.000000e+30 : f32
    %99 = vector.shape_cast %98 : vector<1x8x1xi1> to vector<1x8x1xi1>
    %100 = vector.broadcast %99 : vector<1x8x1xi1> to vector<1x8x4xi1>
    %101 = vector.broadcast %cst_37 : f32 to vector<1x8x4xf32>
    %102 = arith.select %100, %101, %96 : vector<1x8x4xi1>, vector<1x8x4xf32>
    %cst_38 = arith.constant dense<0xFF800000> : vector<1x4xf32>
    %103 = vector.multi_reduction <maximumf>, %102, %cst_38 [1] : vector<1x8x4xf32> to vector<1x4xf32>
    %104 = vector.shape_cast %103 : vector<1x4xf32> to vector<1x1x4xf32>
    %105 = vector.broadcast %104 : vector<1x1x4xf32> to vector<1x8x4xf32>
    %106 = arith.subf %102, %105 : vector<1x8x4xf32>
    %107 = math.exp %106 : vector<1x8x4xf32>
    %cst_39 = arith.constant dense<0.000000e+00> : vector<1x4xf32>
    %108 = vector.multi_reduction <add>, %107, %cst_39 [1] : vector<1x8x4xf32> to vector<1x4xf32>
    %109 = vector.shape_cast %108 : vector<1x4xf32> to vector<1x1x4xf32>
    %110 = tpu.reciprocal %109 {approx = true} : vector<1x1x4xf32> -> vector<1x1x4xf32>
    %111 = vector.broadcast %110 : vector<1x1x4xf32> to vector<1x8x4xf32>
    %112 = arith.mulf %107, %111 : vector<1x8x4xf32>
    %113 = vector.shape_cast %112 : vector<1x8x4xf32> to vector<8x4xf32>
    %cst_40 = arith.constant dense<0.000000e+00> : vector<8x32xf32>
    %114 = tpu.matmul %113, %88, %cst_40 {dimension_numbers = #tpu.dot_dimension_numbers<[1], [1], [0], [0], [0, 0, 1, 0], [], []>} : vector<8x4xf32>, vector<32x4xf32>, vector<8x32xf32> -> vector<8x32xf32>
    %115 = vector.shape_cast %114 : vector<8x32xf32> to vector<1x8x32xf32>
    %116 = arith.mulf %115, %90 : vector<1x8x32xf32>
    %cst_41 = arith.constant dense<0.000000e+00> : vector<1x32xf32>
    %117 = vector.multi_reduction <add>, %116, %cst_41 [1] : vector<1x8x32xf32> to vector<1x32xf32>
    %118 = arith.truncf %117 : vector<1x32xf32> to vector<1x32xbf16>
    %c0_42 = arith.constant 0 : index
    %c0_43 = arith.constant 0 : index
    %119 = vector.load %arg7[%c0_42, %c0_43] : memref<32x32xbf16, #tpu.memory_space<vmem>>, vector<32x32xbf16>
    %cst_44 = arith.constant dense<0.000000e+00> : vector<1x32xf32>
    %120 = tpu.matmul %118, %119, %cst_44 {dimension_numbers = #tpu.dot_dimension_numbers<[1], [0], [0], [1], [0, 0, 1, 1], [], []>} : vector<1x32xbf16>, vector<32x32xbf16>, vector<1x32xf32> -> vector<1x32xf32>
    %121 = arith.addf %120, %12 : vector<1x32xf32>
    %cst_45 = arith.constant dense<0.000000e+00> : vector<1x1xf32>
    %122 = vector.multi_reduction <add>, %4, %cst_45 [1] : vector<1x8x1xf32> to vector<1x1xf32>
    %cst_46 = arith.constant 0.0142857144 : f32
    %123 = vector.broadcast %cst_46 : f32 to vector<1x1xf32>
    %124 = arith.mulf %122, %123 : vector<1x1xf32>
    %125 = arith.truncf %121 : vector<1x32xf32> to vector<1x32xbf16>
    %c0_47 = arith.constant 0 : index
    %c0_48 = arith.constant 0 : index
    %126 = vector.load %arg8[%c0_47, %c0_48] : memref<32x16xbf16, #tpu.memory_space<vmem>>, vector<32x16xbf16>
    %cst_49 = arith.constant dense<0.000000e+00> : vector<1x16xf32>
    %127 = tpu.matmul %125, %126, %cst_49 {dimension_numbers = #tpu.dot_dimension_numbers<[1], [0], [0], [1], [0, 0, 1, 1], [], []>} : vector<1x32xbf16>, vector<32x16xbf16>, vector<1x16xf32> -> vector<1x16xf32>
    %128 = vector.broadcast %124 : vector<1x1xf32> to vector<1x16xf32>
    %129 = arith.mulf %128, %14 : vector<1x16xf32>
    %130 = arith.addf %127, %129 : vector<1x16xf32>
    %131 = arith.addf %130, %13 : vector<1x16xf32>
    %132 = arith.truncf %34 : vector<8x32xf32> to vector<8x32xbf16>
    %c0_50 = arith.constant 0 : index
    %c0_51 = arith.constant 0 : index
    %133 = vector.load %arg9[%c0_50, %c0_51] : memref<32x16xbf16, #tpu.memory_space<vmem>>, vector<32x16xbf16>
    %cst_52 = arith.constant dense<0.000000e+00> : vector<8x16xf32>
    %134 = tpu.matmul %132, %133, %cst_52 {dimension_numbers = #tpu.dot_dimension_numbers<[1], [0], [0], [1], [0, 0, 1, 1], [], []>} : vector<8x32xbf16>, vector<32x16xbf16>, vector<8x16xf32> -> vector<8x16xf32>
    %135 = vector.shape_cast %134 : vector<8x16xf32> to vector<1x8x16xf32>
    %136 = arith.truncf %131 : vector<1x16xf32> to vector<1x16xbf16>
    %c0_53 = arith.constant 0 : index
    %c0_54 = arith.constant 0 : index
    %137 = vector.load %arg10[%c0_53, %c0_54] : memref<16x16xbf16, #tpu.memory_space<vmem>>, vector<16x16xbf16>
    %cst_55 = arith.constant dense<0.000000e+00> : vector<1x16xf32>
    %138 = tpu.matmul %136, %137, %cst_55 {dimension_numbers = #tpu.dot_dimension_numbers<[1], [0], [0], [1], [0, 0, 1, 1], [], []>} : vector<1x16xbf16>, vector<16x16xbf16>, vector<1x16xf32> -> vector<1x16xf32>
    %139 = vector.shape_cast %138 : vector<1x16xf32> to vector<1x1x16xf32>
    %140 = vector.broadcast %139 : vector<1x1x16xf32> to vector<1x8x16xf32>
    %141 = arith.addf %135, %140 : vector<1x8x16xf32>
    %142 = vector.shape_cast %15 : vector<1x16xf32> to vector<1x1x16xf32>
    %143 = vector.broadcast %142 : vector<1x1x16xf32> to vector<1x8x16xf32>
    %144 = arith.addf %141, %143 : vector<1x8x16xf32>
    %cst_56 = arith.constant 5.000000e-01 : f32
    %145 = vector.broadcast %cst_56 : f32 to vector<1x8x16xf32>
    %146 = arith.mulf %145, %144 : vector<1x8x16xf32>
    %147 = arith.mulf %144, %144 : vector<1x8x16xf32>
    %148 = arith.mulf %147, %144 : vector<1x8x16xf32>
    %cst_57 = arith.constant 4.471500e-02 : f32
    %149 = vector.broadcast %cst_57 : f32 to vector<1x8x16xf32>
    %150 = arith.mulf %149, %148 : vector<1x8x16xf32>
    %151 = arith.addf %144, %150 : vector<1x8x16xf32>
    %cst_58 = arith.constant 0.797884583 : f32
    %152 = vector.broadcast %cst_58 : f32 to vector<1x8x16xf32>
    %153 = arith.mulf %152, %151 : vector<1x8x16xf32>
    %154 = math.tanh %153 : vector<1x8x16xf32>
    %cst_59 = arith.constant 1.000000e+00 : f32
    %155 = vector.broadcast %cst_59 : f32 to vector<1x8x16xf32>
    %156 = arith.addf %155, %154 : vector<1x8x16xf32>
    %157 = arith.mulf %146, %156 : vector<1x8x16xf32>
    %158 = vector.shape_cast %157 : vector<1x8x16xf32> to vector<8x16xf32>
    %159 = arith.truncf %158 : vector<8x16xf32> to vector<8x16xbf16>
    %c0_60 = arith.constant 0 : index
    %c0_61 = arith.constant 0 : index
    %160 = vector.load %arg11[%c0_60, %c0_61] : memref<16x16xbf16, #tpu.memory_space<vmem>>, vector<16x16xbf16>
    %cst_62 = arith.constant dense<0.000000e+00> : vector<8x16xf32>
    %161 = tpu.matmul %159, %160, %cst_62 {dimension_numbers = #tpu.dot_dimension_numbers<[1], [0], [0], [1], [0, 0, 1, 1], [], []>} : vector<8x16xbf16>, vector<16x16xbf16>, vector<8x16xf32> -> vector<8x16xf32>
    %162 = vector.broadcast %16 : vector<1x16xf32> to vector<8x16xf32>
    %163 = arith.addf %161, %162 : vector<8x16xf32>
    %164 = arith.addf %163, %1 : vector<8x16xf32>
    %cst_63 = arith.constant 5.000000e-01 : f32
    %165 = vector.broadcast %cst_63 : f32 to vector<8x16xf32>
    %166 = arith.mulf %165, %164 : vector<8x16xf32>
    %167 = arith.mulf %164, %164 : vector<8x16xf32>
    %168 = arith.mulf %167, %164 : vector<8x16xf32>
    %cst_64 = arith.constant 4.471500e-02 : f32
    %169 = vector.broadcast %cst_64 : f32 to vector<8x16xf32>
    %170 = arith.mulf %169, %168 : vector<8x16xf32>
    %171 = arith.addf %164, %170 : vector<8x16xf32>
    %cst_65 = arith.constant 0.797884583 : f32
    %172 = vector.broadcast %cst_65 : f32 to vector<8x16xf32>
    %173 = arith.mulf %172, %171 : vector<8x16xf32>
    %174 = math.tanh %173 : vector<8x16xf32>
    %cst_66 = arith.constant 1.000000e+00 : f32
    %175 = vector.broadcast %cst_66 : f32 to vector<8x16xf32>
    %176 = arith.addf %175, %174 : vector<8x16xf32>
    %177 = arith.mulf %166, %176 : vector<8x16xf32>
    %178 = vector.shape_cast %131 : vector<1x16xf32> to vector<1x1x16xf32>
    %c0_67 = arith.constant 0 : index
    %c0_68 = arith.constant 0 : index
    %c0_69 = arith.constant 0 : index
    %179 = vector.load %arg15[%c0_67, %c0_68, %c0_69] : memref<1x1x16xf32, #tpu.memory_space<vmem>>, vector<1x1x16xf32>
    tpu.vector_store %arg15[%c0_67, %c0_68, %c0_69], %178 {strides = array<i32>} : memref<1x1x16xf32, #tpu.memory_space<vmem>>, vector<1x1x16xf32>,
    %cst_70 = arith.constant 0.000000e+00 : f32
    %180 = vector.broadcast %cst_70 : f32 to vector<8x112xf32>
    %181 = tpu.concatenate %177, %180 in 1 : vector<8x16xf32>, vector<8x112xf32> -> vector<8x128xf32>
    %182 = vector.shape_cast %181 : vector<8x128xf32> to vector<1x8x128xf32>
    %c0_71 = arith.constant 0 : index
    %c0_72 = arith.constant 0 : index
    %c0_73 = arith.constant 0 : index
    %183 = vector.load %arg14[%c0_71, %c0_72, %c0_73] : memref<1x8x128xf32, #tpu.memory_space<vmem>>, vector<1x8x128xf32>
    tpu.vector_store %arg14[%c0_71, %c0_72, %c0_73], %182 {strides = array<i32>} : memref<1x8x128xf32, #tpu.memory_space<vmem>>, vector<1x8x128xf32>,
    return
  }
  func.func @transform_0(%arg0: i32) -> (i32, i32, i32) {
    %c0_i32 = arith.constant 0 : i32
    %c0_i32_0 = arith.constant 0 : i32
    %c0_i32_1 = arith.constant 0 : i32
    return %arg0, %c0_i32, %c0_i32_0 : i32, i32, i32
  }
  func.func @transform_1(%arg0: i32) -> (i32, i32, i32) {
    %c0_i32 = arith.constant 0 : i32
    %c0_i32_0 = arith.constant 0 : i32
    %c0_i32_1 = arith.constant 0 : i32
    return %arg0, %c0_i32, %c0_i32_0 : i32, i32, i32
  }
  func.func @transform_2(%arg0: i32) -> (i32, i32, i32) {
    %c0_i32 = arith.constant 0 : i32
    %c0_i32_0 = arith.constant 0 : i32
    %c0_i32_1 = arith.constant 0 : i32
    return %arg0, %c0_i32, %c0_i32_0 : i32, i32, i32
  }
  func.func @transform_3(%arg0: i32) -> (i32, i32) {
    %c0_i32 = arith.constant 0 : i32
    %c0_i32_0 = arith.constant 0 : i32
    %c0_i32_1 = arith.constant 0 : i32
    return %c0_i32, %c0_i32_0 : i32, i32
  }
  func.func @transform_4(%arg0: i32) -> (i32, i32) {
    %c0_i32 = arith.constant 0 : i32
    %c0_i32_0 = arith.constant 0 : i32
    %c0_i32_1 = arith.constant 0 : i32
    return %c0_i32, %c0_i32_0 : i32, i32
  }
  func.func @transform_5(%arg0: i32) -> (i32, i32) {
    %c0_i32 = arith.constant 0 : i32
    %c0_i32_0 = arith.constant 0 : i32
    %c0_i32_1 = arith.constant 0 : i32
    return %c0_i32, %c0_i32_0 : i32, i32
  }
  func.func @transform_6(%arg0: i32) -> (i32, i32) {
    %c0_i32 = arith.constant 0 : i32
    %c0_i32_0 = arith.constant 0 : i32
    %c0_i32_1 = arith.constant 0 : i32
    return %c0_i32, %c0_i32_0 : i32, i32
  }
  func.func @transform_7(%arg0: i32) -> (i32, i32) {
    %c0_i32 = arith.constant 0 : i32
    %c0_i32_0 = arith.constant 0 : i32
    %c0_i32_1 = arith.constant 0 : i32
    return %c0_i32, %c0_i32_0 : i32, i32
  }
  func.func @transform_8(%arg0: i32) -> (i32, i32) {
    %c0_i32 = arith.constant 0 : i32
    %c0_i32_0 = arith.constant 0 : i32
    %c0_i32_1 = arith.constant 0 : i32
    return %c0_i32, %c0_i32_0 : i32, i32
  }
  func.func @transform_9(%arg0: i32) -> (i32, i32) {
    %c0_i32 = arith.constant 0 : i32
    %c0_i32_0 = arith.constant 0 : i32
    %c0_i32_1 = arith.constant 0 : i32
    return %c0_i32, %c0_i32_0 : i32, i32
  }
  func.func @transform_10(%arg0: i32) -> (i32, i32) {
    %c0_i32 = arith.constant 0 : i32
    %c0_i32_0 = arith.constant 0 : i32
    %c0_i32_1 = arith.constant 0 : i32
    return %c0_i32, %c0_i32_0 : i32, i32
  }
  func.func @transform_11(%arg0: i32) -> (i32, i32) {
    %c0_i32 = arith.constant 0 : i32
    %c0_i32_0 = arith.constant 0 : i32
    %c0_i32_1 = arith.constant 0 : i32
    return %c0_i32, %c0_i32_0 : i32, i32
  }
  func.func @transform_12(%arg0: i32) -> (i32, i32) {
    %c0_i32 = arith.constant 0 : i32
    %c0_i32_0 = arith.constant 0 : i32
    %c0_i32_1 = arith.constant 0 : i32
    return %c0_i32, %c0_i32_0 : i32, i32
  }
  func.func @transform_13(%arg0: i32) -> (i32, i32, i32) {
    %c0_i32 = arith.constant 0 : i32
    %c0_i32_0 = arith.constant 0 : i32
    %c0_i32_1 = arith.constant 0 : i32
    return %arg0, %c0_i32, %c0_i32_0 : i32, i32, i32
  }
  func.func @transform_14(%arg0: i32) -> (i32, i32, i32) {
    %c0_i32 = arith.constant 0 : i32
    %c0_i32_0 = arith.constant 0 : i32
    %c0_i32_1 = arith.constant 0 : i32
    return %arg0, %c0_i32, %c0_i32_0 : i32, i32, i32
  }
}

</mosaic_0001>

<llo_original>
// kernel: block_gen_forward.1
$region0: #{block_gen_forward.1}
  #allocation0 [shape = 'u32[]', space=smem, size = 0x4, offset = 0x4, fixed_abs, tag = 'smem constant byte address 0x4 - core index']
  #allocation1 [shape = 'u32[144,128]{1,0:T(1,128)}', space=vmem, size = 0x12000, scoped, tag = 'internal scratch']
  %s0 = inlined_call_operand.vmem [shape: f32[2,8,16], index: 0, kind: input, shape index: {}]
  %s1 = inlined_call_operand.vmem [shape: f32[2,1,16], index: 1, kind: input, shape index: {}]
  %s2 = inlined_call_operand.vmem [shape: f32[2,8,1], index: 2, kind: input, shape index: {}]
  %s3 = inlined_call_operand.vmem [shape: bf16[16,32], index: 3, kind: input, shape index: {}]
  %s4 = inlined_call_operand.vmem [shape: bf16[32,32], index: 4, kind: input, shape index: {}]
  %s5 = inlined_call_operand.vmem [shape: bf16[32,64], index: 5, kind: input, shape index: {}]
  %s6 = inlined_call_operand.vmem [shape: bf16[32,32], index: 6, kind: input, shape index: {}]
  %s7 = inlined_call_operand.vmem [shape: bf16[32,16], index: 7, kind: input, shape index: {}]
  %s8 = inlined_call_operand.vmem [shape: bf16[32,16], index: 8, kind: input, shape index: {}]
  %s9 = inlined_call_operand.vmem [shape: bf16[16,16], index: 9, kind: input, shape index: {}]
  %s10 = inlined_call_operand.vmem [shape: bf16[16,16], index: 10, kind: input, shape index: {}]
  %s11 = inlined_call_operand.vmem [shape: f32[32,4], index: 11, kind: input, shape index: {}]
  %s12 = inlined_call_operand.vmem [shape: f32[11,32], index: 12, kind: input, shape index: {}]
  %s13 = inlined_call_operand.hbm [shape: f32[2,8,128], index: 13, kind: output, shape index: {0}]
  %s14 = inlined_call_operand.hbm [shape: f32[2,1,16], index: 14, kind: output, shape index: {1}]
  %15 = xla_tuple %s13, %s14
  %s16 = sld [smem:[#allocation0]]
  $region93: #{block_gen_forward.1} parent=0
    _
  %s18 = ssub.s32 1, %s16
  %s19 = scalar_select 0, %s18, %s16
  $region1: #{block_gen_forward.1} parent=0
    #allocation2 [shape = 'u8[8192]{0}', space=vmem, size = 0x2000, scoped, tag = 'output window, operand 0']
    #allocation3 [shape = 's32[2]{0}', space=sflag, size = 0x8, scoped, tag = 'scoped memory for block_gen_forward.1']
    #allocation4 [shape = 'u8[1024]{0}', space=vmem, size = 0x400, scoped, tag = 'output window, operand 1']
    #allocation5 [shape = 's32[2]{0}', space=sflag, size = 0x8, scoped, tag = 'scoped memory for block_gen_forward.1']
    %20 = vsyncpa [#allocation3], 0
    %s21 = scalar_lea.sflag [#allocation3], 1
    %22 = vsyncpa %s21, 0
    %23 = vsyncpa [#allocation5], 0
    %s24 = scalar_lea.sflag [#allocation5], 1
    %25 = vsyncpa %s24, 0
    loop: start=0, step=1, limit=4
    $region2: #{block_gen_forward.1} parent=1 // loop_pre_header
      _
    $region3: #{block_gen_forward.1} parent=1 // loop_header
      %s27 = sphi 0, %s31
      %p28 = scmp.ge.s32.totalorder %s27, 4
      %s37 = sphi 0, %s39
      %s40 = sphi 0, %s37
      %s41 = sphi 0, %s40
      %s57 = sphi 0, %s41
      %s63 = sphi 0, %s65
      %s66 = sphi 0, %s63
      %s67 = sphi 0, %s66
      %s83 = sphi 0, %s67
      %s89 = sphi 0, %s91
      %s92 = sphi 0, %s89
      %s93 = sphi 0, %s92
      %s109 = sphi 0, %s93
      %s113 = sphi 0, %s113
      %s115 = sphi 0, %s113
      %s116 = sphi 0, %s115
      %s130 = sphi 0, %s116
      %s134 = sphi 0, %s134
      %s136 = sphi 0, %s134
      %s137 = sphi 0, %s136
      %s151 = sphi 0, %s137
      %s155 = sphi 0, %s155
      %s157 = sphi 0, %s155
      %s158 = sphi 0, %s157
      %s172 = sphi 0, %s158
      %s176 = sphi 0, %s176
      %s178 = sphi 0, %s176
      %s179 = sphi 0, %s178
      %s193 = sphi 0, %s179
      %s197 = sphi 0, %s197
      %s199 = sphi 0, %s197
      %s200 = sphi 0, %s199
      %s214 = sphi 0, %s200
      %s218 = sphi 0, %s218
      %s220 = sphi 0, %s218
      %s221 = sphi 0, %s220
      %s235 = sphi 0, %s221
      %s239 = sphi 0, %s239
      %s241 = sphi 0, %s239
      %s242 = sphi 0, %s241
      %s256 = sphi 0, %s242
      %s260 = sphi 0, %s260
      %s262 = sphi 0, %s260
      %s263 = sphi 0, %s262
      %s277 = sphi 0, %s263
      %s281 = sphi 0, %s281
      %s283 = sphi 0, %s281
      %s284 = sphi 0, %s283
      %s298 = sphi 0, %s284
      %s302 = sphi 0, %s302
      %s304 = sphi 0, %s302
      %s305 = sphi 0, %s304
      %s319 = sphi 0, %s305
      %s325 = sphi 0, %s327
      %s328 = sphi 0, %s325
      %s329 = sphi 0, %s328
      %s345 = sphi 0, %s329
      %s351 = sphi 0, %s353
      %s354 = sphi 0, %s351
      %s355 = sphi 0, %s354
      %s371 = sphi 0, %s355
    $region4: #{block_gen_forward.1} parent=1 // loop_header_branch
      %30 = sbr.rel (%p28) target = $region8
    $region5: #{block_gen_forward.1} parent=1 // loop_body
      %s32 = ssub.s32 %s27, 1
      %s33 = ssub.s32 %s27, 2
      %s34 = sadd.s32 %s27, 1
      %s35 = ssub.s32 %s27, %s34
      %p36 = scmp.eq.s32.totalorder %s35, 0
      %s38 = sadd.s32 %s37, 1
      %s39 = scalar_select %p36, %s37, %s38
      %p42 = pneg %p36
      %p43 = scmp.eq.s32.totalorder %s27, 1
      %p44 = por %p42, %p43
      %p45 = scmp.ne.s32.totalorder %s37, %s40
      %p46 = scmp.eq.s32.totalorder %s27, 0
      %p47 = por %p45, %p46
      %p48 = scmp.ne.s32.totalorder %s37, %s40
      %p49 = scmp.eq.s32.totalorder %s32, 1
      %p50 = por %p48, %p49
      %p51 = scmp.ne.s32.totalorder %s40, %s41
      %p52 = scmp.eq.s32.totalorder %s32, 0
      %p53 = por %p51, %p52
      %p54 = scmp.ne.s32.totalorder %s40, %s41
      %p55 = scmp.eq.s32.totalorder %s33, 1
      %p56 = por %p54, %p55
      %p58 = scmp.ne.s32.totalorder %s41, %s57
      %p59 = scmp.eq.s32.totalorder %s33, 0
      %p60 = por %p58, %p59
      %s61 = ssub.s32 %s27, %s34
      %p62 = scmp.eq.s32.totalorder %s61, 0
      %s64 = sadd.s32 %s63, 1
      %s65 = scalar_select %p62, %s63, %s64
      %p68 = pneg %p62
      %p69 = scmp.eq.s32.totalorder %s27, 1
      %p70 = por %p68, %p69
      %p71 = scmp.ne.s32.totalorder %s63, %s66
      %p72 = scmp.eq.s32.totalorder %s27, 0
      %p73 = por %p71, %p72
      %p74 = scmp.ne.s32.totalorder %s63, %s66
      %p75 = scmp.eq.s32.totalorder %s32, 1
      %p76 = por %p74, %p75
      %p77 = scmp.ne.s32.totalorder %s66, %s67
      %p78 = scmp.eq.s32.totalorder %s32, 0
      %p79 = por %p77, %p78
      %p80 = scmp.ne.s32.totalorder %s66, %s67
      %p81 = scmp.eq.s32.totalorder %s33, 1
      %p82 = por %p80, %p81
      %p84 = scmp.ne.s32.totalorder %s67, %s83
      %p85 = scmp.eq.s32.totalorder %s33, 0
      %p86 = por %p84, %p85
      %s87 = ssub.s32 %s27, %s34
      %p88 = scmp.eq.s32.totalorder %s87, 0
      %s90 = sadd.s32 %s89, 1
      %s91 = scalar_select %p88, %s89, %s90
      %p94 = pneg %p88
      %p95 = scmp.eq.s32.totalorder %s27, 1
      %p96 = por %p94, %p95
      %p97 = scmp.ne.s32.totalorder %s89, %s92
      %p98 = scmp.eq.s32.totalorder %s27, 0
      %p99 = por %p97, %p98
      %p100 = scmp.ne.s32.totalorder %s89, %s92
      %p101 = scmp.eq.s32.totalorder %s32, 1
      %p102 = por %p100, %p101
      %p103 = scmp.ne.s32.totalorder %s92, %s93
      %p104 = scmp.eq.s32.totalorder %s32, 0
      %p105 = por %p103, %p104
      %p106 = scmp.ne.s32.totalorder %s92, %s93
      %p107 = scmp.eq.s32.totalorder %s33, 1
      %p108 = por %p106, %p107
      %p110 = scmp.ne.s32.totalorder %s93, %s109
      %p111 = scmp.eq.s32.totalorder %s33, 0
      %p112 = por %p110, %p111
      %s114 = sadd.s32 %s113, 1
      %p117 = scmp.eq.s32.totalorder %s27, 1
      %p118 = scmp.ne.s32.totalorder %s113, %s115
      %p119 = scmp.eq.s32.totalorder %s27, 0
      %p120 = por %p118, %p119
      %p121 = scmp.ne.s32.totalorder %s113, %s115
      %p122 = scmp.eq.s32.totalorder %s32, 1
      %p123 = por %p121, %p122
      %p124 = scmp.ne.s32.totalorder %s115, %s116
      %p125 = scmp.eq.s32.totalorder %s32, 0
      %p126 = por %p124, %p125
      %p127 = scmp.ne.s32.totalorder %s115, %s116
      %p128 = scmp.eq.s32.totalorder %s33, 1
      %p129 = por %p127, %p128
      %p131 = scmp.ne.s32.totalorder %s116, %s130
      %p132 = scmp.eq.s32.totalorder %s33, 0
      %p133 = por %p131, %p132
      %s135 = sadd.s32 %s134, 1
      %p138 = scmp.eq.s32.totalorder %s27, 1
      %p139 = scmp.ne.s32.totalorder %s134, %s136
      %p140 = scmp.eq.s32.totalorder %s27, 0
      %p141 = por %p139, %p140
      %p142 = scmp.ne.s32.totalorder %s134, %s136
      %p143 = scmp.eq.s32.totalorder %s32, 1
      %p144 = por %p142, %p143
      %p145 = scmp.ne.s32.totalorder %s136, %s137
      %p146 = scmp.eq.s32.totalorder %s32, 0
      %p147 = por %p145, %p146
      %p148 = scmp.ne.s32.totalorder %s136, %s137
      %p149 = scmp.eq.s32.totalorder %s33, 1
      %p150 = por %p148, %p149
      %p152 = scmp.ne.s32.totalorder %s137, %s151
      %p153 = scmp.eq.s32.totalorder %s33, 0
      %p154 = por %p152, %p153
      %s156 = sadd.s32 %s155, 1
      %p159 = scmp.eq.s32.totalorder %s27, 1
      %p160 = scmp.ne.s32.totalorder %s155, %s157
      %p161 = scmp.eq.s32.totalorder %s27, 0
      %p162 = por %p160, %p161
      %p163 = scmp.ne.s32.totalorder %s155, %s157
      %p164 = scmp.eq.s32.totalorder %s32, 1
      %p165 = por %p163, %p164
      %p166 = scmp.ne.s32.totalorder %s157, %s158
      %p167 = scmp.eq.s32.totalorder %s32, 0
      %p168 = por %p166, %p167
      %p169 = scmp.ne.s32.totalorder %s157, %s158
      %p170 = scmp.eq.s32.totalorder %s33, 1
      %p171 = por %p169, %p170
      %p173 = scmp.ne.s32.totalorder %s158, %s172
      %p174 = scmp.eq.s32.totalorder %s33, 0
      %p175 = por %p173, %p174
      %s177 = sadd.s32 %s176, 1
      %p180 = scmp.eq.s32.totalorder %s27, 1
      %p181 = scmp.ne.s32.totalorder %s176, %s178
      %p182 = scmp.eq.s32.totalorder %s27, 0
      %p183 = por %p181, %p182
      %p184 = scmp.ne.s32.totalorder %s176, %s178
      %p185 = scmp.eq.s32.totalorder %s32, 1
      %p186 = por %p184, %p185
      %p187 = scmp.ne.s32.totalorder %s178, %s179
      %p188 = scmp.eq.s32.totalorder %s32, 0
      %p189 = por %p187, %p188
      %p190 = scmp.ne.s32.totalorder %s178, %s179
      %p191 = scmp.eq.s32.totalorder %s33, 1
      %p192 = por %p190, %p191
      %p194 = scmp.ne.s32.totalorder %s179, %s193
      %p195 = scmp.eq.s32.totalorder %s33, 0
      %p196 = por %p194, %p195
      %s198 = sadd.s32 %s197, 1
      %p201 = scmp.eq.s32.totalorder %s27, 1
      %p202 = scmp.ne.s32.totalorder %s197, %s199
      %p203 = scmp.eq.s32.totalorder %s27, 0
      %p204 = por %p202, %p203
      %p205 = scmp.ne.s32.totalorder %s197, %s199
      %p206 = scmp.eq.s32.totalorder %s32, 1
      %p207 = por %p205, %p206
      %p208 = scmp.ne.s32.totalorder %s199, %s200
      %p209 = scmp.eq.s32.totalorder %s32, 0
      %p210 = por %p208, %p209
      %p211 = scmp.ne.s32.totalorder %s199, %s200
      %p212 = scmp.eq.s32.totalorder %s33, 1
      %p213 = por %p211, %p212
      %p215 = scmp.ne.s32.totalorder %s200, %s214
      %p216 = scmp.eq.s32.totalorder %s33, 0
      %p217 = por %p215, %p216
      %s219 = sadd.s32 %s218, 1
      %p222 = scmp.eq.s32.totalorder %s27, 1
      %p223 = scmp.ne.s32.totalorder %s218, %s220
      %p224 = scmp.eq.s32.totalorder %s27, 0
      %p225 = por %p223, %p224
      %p226 = scmp.ne.s32.totalorder %s218, %s220
      %p227 = scmp.eq.s32.totalorder %s32, 1
      %p228 = por %p226, %p227
      %p229 = scmp.ne.s32.totalorder %s220, %s221
      %p230 = scmp.eq.s32.totalorder %s32, 0
      %p231 = por %p229, %p230
      %p232 = scmp.ne.s32.totalorder %s220, %s221
      %p233 = scmp.eq.s32.totalorder %s33, 1
      %p234 = por %p232, %p233
      %p236 = scmp.ne.s32.totalorder %s221, %s235
      %p237 = scmp.eq.s32.totalorder %s33, 0
      %p238 = por %p236, %p237
      %s240 = sadd.s32 %s239, 1
      %p243 = scmp.eq.s32.totalorder %s27, 1
      %p244 = scmp.ne.s32.totalorder %s239, %s241
      %p245 = scmp.eq.s32.totalorder %s27, 0
      %p246 = por %p244, %p245
      %p247 = scmp.ne.s32.totalorder %s239, %s241
      %p248 = scmp.eq.s32.totalorder %s32, 1
      %p249 = por %p247, %p248
      %p250 = scmp.ne.s32.totalorder %s241, %s242
      %p251 = scmp.eq.s32.totalorder %s32, 0
      %p252 = por %p250, %p251
      %p253 = scmp.ne.s32.totalorder %s241, %s242
      %p254 = scmp.eq.s32.totalorder %s33, 1
      %p255 = por %p253, %p254
      %p257 = scmp.ne.s32.totalorder %s242, %s256
      %p258 = scmp.eq.s32.totalorder %s33, 0
      %p259 = por %p257, %p258
      %s261 = sadd.s32 %s260, 1
      %p264 = scmp.eq.s32.totalorder %s27, 1
      %p265 = scmp.ne.s32.totalorder %s260, %s262
      %p266 = scmp.eq.s32.totalorder %s27, 0
      %p267 = por %p265, %p266
      %p268 = scmp.ne.s32.totalorder %s260, %s262
      %p269 = scmp.eq.s32.totalorder %s32, 1
      %p270 = por %p268, %p269
      %p271 = scmp.ne.s32.totalorder %s262, %s263
      %p272 = scmp.eq.s32.totalorder %s32, 0
      %p273 = por %p271, %p272
      %p274 = scmp.ne.s32.totalorder %s262, %s263
      %p275 = scmp.eq.s32.totalorder %s33, 1
      %p276 = por %p274, %p275
      %p278 = scmp.ne.s32.totalorder %s263, %s277
      %p279 = scmp.eq.s32.totalorder %s33, 0
      %p280 = por %p278, %p279
      %s282 = sadd.s32 %s281, 1
      %p285 = scmp.eq.s32.totalorder %s27, 1
      %p286 = scmp.ne.s32.totalorder %s281, %s283
      %p287 = scmp.eq.s32.totalorder %s27, 0
      %p288 = por %p286, %p287
      %p289 = scmp.ne.s32.totalorder %s281, %s283
      %p290 = scmp.eq.s32.totalorder %s32, 1
      %p291 = por %p289, %p290
      %p292 = scmp.ne.s32.totalorder %s283, %s284
      %p293 = scmp.eq.s32.totalorder %s32, 0
      %p294 = por %p292, %p293
      %p295 = scmp.ne.s32.totalorder %s283, %s284
      %p296 = scmp.eq.s32.totalorder %s33, 1
      %p297 = por %p295, %p296
      %p299 = scmp.ne.s32.totalorder %s284, %s298
      %p300 = scmp.eq.s32.totalorder %s33, 0
      %p301 = por %p299, %p300
      %s303 = sadd.s32 %s302, 1
      %p306 = scmp.eq.s32.totalorder %s27, 1
      %p307 = scmp.ne.s32.totalorder %s302, %s304
      %p308 = scmp.eq.s32.totalorder %s27, 0
      %p309 = por %p307, %p308
      %p310 = scmp.ne.s32.totalorder %s302, %s304
      %p311 = scmp.eq.s32.totalorder %s32, 1
      %p312 = por %p310, %p311
      %p313 = scmp.ne.s32.totalorder %s304, %s305
      %p314 = scmp.eq.s32.totalorder %s32, 0
      %p315 = por %p313, %p314
      %p316 = scmp.ne.s32.totalorder %s304, %s305
      %p317 = scmp.eq.s32.totalorder %s33, 1
      %p318 = por %p316, %p317
      %p320 = scmp.ne.s32.totalorder %s305, %s319
      %p321 = scmp.eq.s32.totalorder %s33, 0
      %p322 = por %p320, %p321
      %s323 = ssub.s32 %s27, %s34
      %p324 = scmp.eq.s32.totalorder %s323, 0
      %s326 = sadd.s32 %s325, 1
      %s327 = scalar_select %p324, %s325, %s326
      %p330 = pneg %p324
      %p331 = scmp.eq.s32.totalorder %s27, 1
      %p332 = por %p330, %p331
      %p333 = scmp.ne.s32.totalorder %s325, %s328
      %p334 = scmp.eq.s32.totalorder %s27, 0
      %p335 = por %p333, %p334
      %p336 = scmp.ne.s32.totalorder %s325, %s328
      %p337 = scmp.eq.s32.totalorder %s32, 1
      %p338 = por %p336, %p337
      %p339 = scmp.ne.s32.totalorder %s328, %s329
      %p340 = scmp.eq.s32.totalorder %s32, 0
      %p341 = por %p339, %p340
      %p342 = scmp.ne.s32.totalorder %s328, %s329
      %p343 = scmp.eq.s32.totalorder %s33, 1
      %p344 = por %p342, %p343
      %p346 = scmp.ne.s32.totalorder %s329, %s345
      %p347 = scmp.eq.s32.totalorder %s33, 0
      %p348 = por %p346, %p347
      %s349 = ssub.s32 %s27, %s34
      %p350 = scmp.eq.s32.totalorder %s349, 0
      %s352 = sadd.s32 %s351, 1
      %s353 = scalar_select %p350, %s351, %s352
      %p356 = pneg %p350
      %p357 = scmp.eq.s32.totalorder %s27, 1
      %p358 = por %p356, %p357
      %p359 = scmp.ne.s32.totalorder %s351, %s354
      %p360 = scmp.eq.s32.totalorder %s27, 0
      %p361 = por %p359, %p360
      %p362 = scmp.ne.s32.totalorder %s351, %s354
      %p363 = scmp.eq.s32.totalorder %s32, 1
      %p364 = por %p362, %p363
      %p365 = scmp.ne.s32.totalorder %s354, %s355
      %p366 = scmp.eq.s32.totalorder %s32, 0
      %p367 = por %p365, %p366
      %p368 = scmp.ne.s32.totalorder %s354, %s355
      %p369 = scmp.eq.s32.totalorder %s33, 1
      %p370 = por %p368, %p369
      %p372 = scmp.ne.s32.totalorder %s355, %s371
      %p373 = scmp.eq.s32.totalorder %s33, 0
      %p374 = por %p372, %p373
      %p375 = scmp.le.s32.totalorder 1, %s27
      %p376 = scmp.lt.s32.totalorder %s27, 3
      %p377 = pnand %p375, %p376
      %p378 = pneg %p377
      // Predicated region
      $region9: #{block_gen_forward.1} parent=5 // pred_check
        _
      $region10: #{block_gen_forward.1} parent=5 // pred_check_branch
        %380 = sbr.rel (%p377) target = $region12
      $region11: #{block_gen_forward.1} parent=5 // pred_region
        %s381 = ssub.s32 %s27, 1
        // Predicated region
        $region13: #{block_gen_forward.1} parent=11 // pred_check
          %p382 = pneg %p126
        $region14: #{block_gen_forward.1} parent=11 // pred_check_branch
          %384 = sbr.rel (%p382) target = $region16
        $region15: #{block_gen_forward.1} parent=11 // pred_region
          _
        $region16: #{block_gen_forward.1} parent=11 // pred_fallthru
          _
        // Predicated region
        $region17: #{block_gen_forward.1} parent=11 // pred_check
          %p385 = pneg %p147
        $region18: #{block_gen_forward.1} parent=11 // pred_check_branch
          %387 = sbr.rel (%p385) target = $region20
        $region19: #{block_gen_forward.1} parent=11 // pred_region
          _
        $region20: #{block_gen_forward.1} parent=11 // pred_fallthru
          _
        // Predicated region
        $region21: #{block_gen_forward.1} parent=11 // pred_check
          %p388 = pneg %p168
        $region22: #{block_gen_forward.1} parent=11 // pred_check_branch
          %390 = sbr.rel (%p388) target = $region24
        $region23: #{block_gen_forward.1} parent=11 // pred_region
          _
        $region24: #{block_gen_forward.1} parent=11 // pred_fallthru
          _
        // Predicated region
        $region25: #{block_gen_forward.1} parent=11 // pred_check
          %p391 = pneg %p189
        $region26: #{block_gen_forward.1} parent=11 // pred_check_branch
          %393 = sbr.rel (%p391) target = $region28
        $region27: #{block_gen_forward.1} parent=11 // pred_region
          _
        $region28: #{block_gen_forward.1} parent=11 // pred_fallthru
          _
        // Predicated region
        $region29: #{block_gen_forward.1} parent=11 // pred_check
          %p394 = pneg %p210
        $region30: #{block_gen_forward.1} parent=11 // pred_check_branch
          %396 = sbr.rel (%p394) target = $region32
        $region31: #{block_gen_forward.1} parent=11 // pred_region
          _
        $region32: #{block_gen_forward.1} parent=11 // pred_fallthru
          _
        // Predicated region
        $region33: #{block_gen_forward.1} parent=11 // pred_check
          %p397 = pneg %p231
        $region34: #{block_gen_forward.1} parent=11 // pred_check_branch
          %399 = sbr.rel (%p397) target = $region36
        $region35: #{block_gen_forward.1} parent=11 // pred_region
          _
        $region36: #{block_gen_forward.1} parent=11 // pred_fallthru
          _
        // Predicated region
        $region37: #{block_gen_forward.1} parent=11 // pred_check
          %p400 = pneg %p252
        $region38: #{block_gen_forward.1} parent=11 // pred_check_branch
          %402 = sbr.rel (%p400) target = $region40
        $region39: #{block_gen_forward.1} parent=11 // pred_region
          _
        $region40: #{block_gen_forward.1} parent=11 // pred_fallthru
          _
        // Predicated region
        $region41: #{block_gen_forward.1} parent=11 // pred_check
          %p403 = pneg %p273
        $region42: #{block_gen_forward.1} parent=11 // pred_check_branch
          %405 = sbr.rel (%p403) target = $region44
        $region43: #{block_gen_forward.1} parent=11 // pred_region
          _
        $region44: #{block_gen_forward.1} parent=11 // pred_fallthru
          _
        // Predicated region
        $region45: #{block_gen_forward.1} parent=11 // pred_check
          %p406 = pneg %p294
        $region46: #{block_gen_forward.1} parent=11 // pred_check_branch
          %408 = sbr.rel (%p406) target = $region48
        $region47: #{block_gen_forward.1} parent=11 // pred_region
          _
        $region48: #{block_gen_forward.1} parent=11 // pred_fallthru
          _
        // Predicated region
        $region49: #{block_gen_forward.1} parent=11 // pred_check
          %p409 = pneg %p315
        $region50: #{block_gen_forward.1} parent=11 // pred_check_branch
          %411 = sbr.rel (%p409) target = $region52
        $region51: #{block_gen_forward.1} parent=11 // pred_region
          _
        $region52: #{block_gen_forward.1} parent=11 // pred_fallthru
          _
      $region12: #{block_gen_forward.1} parent=5 // pred_fallthru
        _
      %p412 = scmp.lt.s32.totalorder %s27, 2
      // Predicated region
      $region53: #{block_gen_forward.1} parent=5 // pred_check
        %p413 = pneg %p412
      $region54: #{block_gen_forward.1} parent=5 // pred_check_branch
        %415 = sbr.rel (%p413) target = $region56
      $region55: #{block_gen_forward.1} parent=5 // pred_region
        // Predicated region
        $region57: #{block_gen_forward.1} parent=55 // pred_check
          %p416 = pneg %p47
        $region58: #{block_gen_forward.1} parent=55 // pred_check_branch
          %418 = sbr.rel (%p416) target = $region60
        $region59: #{block_gen_forward.1} parent=55 // pred_region
          %p419 = scmp.lt.s32.totalorder %s27, 1
          %s420 = scalar_select %p419, %s27, 1
          %s421 = smul.addr %s420, 8
          %s422 = scalar_lea.vmem %s0, %s421
        $region60: #{block_gen_forward.1} parent=55 // pred_fallthru
          _
        // Predicated region
        $region61: #{block_gen_forward.1} parent=55 // pred_check
          %p423 = pneg %p73
        $region62: #{block_gen_forward.1} parent=55 // pred_check_branch
          %425 = sbr.rel (%p423) target = $region64
        $region63: #{block_gen_forward.1} parent=55 // pred_region
          %p426 = scmp.lt.s32.totalorder %s27, 1
          %s427 = scalar_select %p426, %s27, 1
          %s428 = scalar_lea.vmem %s1, %s427
        $region64: #{block_gen_forward.1} parent=55 // pred_fallthru
          _
        // Predicated region
        $region65: #{block_gen_forward.1} parent=55 // pred_check
          %p429 = pneg %p99
        $region66: #{block_gen_forward.1} parent=55 // pred_check_branch
          %431 = sbr.rel (%p429) target = $region68
        $region67: #{block_gen_forward.1} parent=55 // pred_region
          %p432 = scmp.lt.s32.totalorder %s27, 1
          %s433 = scalar_select %p432, %s27, 1
          %s434 = smul.addr %s433, 8
          %s435 = scalar_lea.vmem %s2, %s434
        $region68: #{block_gen_forward.1} parent=55 // pred_fallthru
          _
      $region56: #{block_gen_forward.1} parent=5 // pred_fallthru
        _
      %p436 = scmp.le.s32.totalorder 1, %s27
      %p437 = scmp.lt.s32.totalorder %s27, 3
      %p438 = pnand %p436, %p437
      %p439 = pneg %p438
      // Predicated region
      $region69: #{block_gen_forward.1} parent=5 // pred_check
        _
      $region70: #{block_gen_forward.1} parent=5 // pred_check_branch
        %441 = sbr.rel (%p438) target = $region72
      $region71: #{block_gen_forward.1} parent=5 // pred_region
        %s442 = ssub.s32 %s27, 1
        %p443 = scmp.lt.s32.totalorder %s32, 1
        %s444 = scalar_select %p443, %s32, 1
        %s445 = smul.addr %s444, 8
        %s446 = scalar_lea.vmem %s0, %s445
        %p447 = pneg %p53
        %p448 = pneg %p50
        %p449 = scmp.lt.s32.totalorder %s32, 1
        %s450 = scalar_select %p449, %s32, 1
        %s451 = scalar_lea.vmem %s1, %s450
        %p452 = pneg %p79
        %p453 = pneg %p76
        %p454 = scmp.lt.s32.totalorder %s32, 1
        %s455 = scalar_select %p454, %s32, 1
        %s456 = smul.addr %s455, 8
        %s457 = scalar_lea.vmem %s2, %s456
        %p458 = pneg %p105
        %p459 = pneg %p102
        %p460 = pneg %p126
        %p461 = pneg %p123
        %p462 = pneg %p147
        %p463 = pneg %p144
        %p464 = pneg %p168
        %p465 = pneg %p165
        %p466 = pneg %p189
        %p467 = pneg %p186
        %p468 = pneg %p210
        %p469 = pneg %p207
        %p470 = pneg %p231
        %p471 = pneg %p228
        %p472 = pneg %p252
        %p473 = pneg %p249
        %p474 = pneg %p273
        %p475 = pneg %p270
        %p476 = pneg %p294
        %p477 = pneg %p291
        %p478 = pneg %p315
        %p479 = pneg %p312
        %p480 = pneg %p341
        %p481 = pneg %p338
        %s482 = sand.u32 %s328, 1
        %s483 = scalar_lea.sflag [#allocation3], %s482
        %s484 = sand.u32 %s328, 1
        %s485 = smul.addr %s484, 8
        %s486 = scalar_lea.vmem [#allocation2], %s485
        %p487 = pneg %p367
        %p488 = pneg %p364
        %s489 = sand.u32 %s354, 1
        %s490 = scalar_lea.sflag [#allocation5], %s489
        %s491 = sand.u32 %s354, 1
        %s492 = scalar_lea.vmem [#allocation4], %s491
        %p493 = scmp.lt.s32.totalorder %s32, 1
        %s494 = scalar_select %p493, %s32, 1
        %s495 = smul.addr %s494, 8
        %s496 = scalar_lea.vmem %s0, %s495
        %p497 = scmp.lt.s32.totalorder %s32, 1
        %s498 = scalar_select %p497, %s32, 1
        %s499 = scalar_lea.vmem %s1, %s498
        %p500 = scmp.lt.s32.totalorder %s32, 1
        %s501 = scalar_select %p500, %s32, 1
        %s502 = smul.addr %s501, 8
        %s503 = scalar_lea.vmem %s2, %s502
        %v505 = vld [vmem:[%s496] sm:$0xff]
        %v506 = vld [vmem:[%s499] sm:$0x1]
        %v507 = vld [vmem:[%s503] sm:$0xff]
        %v508 = vld [vmem:[%s12] sm:$0xff]
        %v509 = vld [vmem:[%s12 + $0x8] sm:$0x7]
        %v510 = vld [vmem:[%s3] sm:$0xf]
        %v511 = vld [vmem:[%s3 + $0x4] sm:$0xf]
        %v512 = vpack.c.bf16 %v505, %v505
        %v513 = vlaneseq
        %v514 = vshrl.u32 %v513, 7
        %v515 = vsub.s32 0, %v514
        %v516 = vrot.slane %v508, %v515
        %v519 = vunpack.c.l.b16 %v510
        %v520 = vunpack.c.l.b16 %v511
        %v521 = vpack.c.b16 %v520, %v519
        %vm523 = vcmask 130048
        %v525 = vsel %vm523, %v512, 0
        %527 = vmatprep.subr.bf16.mxu0 0
        %528 = vmatpush1.bf16.msra.mxu0 %v521
        %529 = vmatprep.subr.bf16.mxu0 0
        %530 = vmatpush1.bf16.msra.mxu0 0
        %531 = vmatprep.subr.bf16.mxu0 0
        %532 = vmatpush1.bf16.msra.mxu0 0
        %533 = vmatprep.subr.bf16.mxu0 0
        %534 = vmatpush1.bf16.msra.mxu0 0
        %535 = vmatprep.subr.bf16.mxu0 0
        %536 = vmatpush1.bf16.msra.mxu0 0
        %537 = vmatprep.subr.bf16.mxu0 0
        %538 = vmatpush1.bf16.msra.mxu0 0
        %539 = vmatprep.subr.bf16.mxu0 0
        %540 = vmatpush1.bf16.msra.mxu0 0
        %541 = vmatprep.subr.bf16.mxu0 0
        %542 = vmatpush1.bf16.msra.mxu0 0
        %543 = vmatprep.subr.bf16.mxu0 0
        %544 = vmatpush1.bf16.msra.mxu0 0
        %545 = vmatprep.subr.bf16.mxu0 0
        %546 = vmatpush1.bf16.msra.mxu0 0
        %547 = vmatprep.subr.bf16.mxu0 0
        %548 = vmatpush1.bf16.msra.mxu0 0
        %549 = vmatprep.subr.bf16.mxu0 0
        %550 = vmatpush1.bf16.msra.mxu0 0
        %551 = vmatprep.subr.bf16.mxu0 0
        %552 = vmatpush1.bf16.msra.mxu0 0
        %553 = vmatprep.subr.bf16.mxu0 0
        %554 = vmatpush1.bf16.msra.mxu0 0
        %555 = vmatprep.subr.bf16.mxu0 0
        %556 = vmatpush1.bf16.msra.mxu0 0
        %557 = vmatprep.subr.bf16.mxu0 0
        %558 = vmatpush1.bf16.msra.mxu0 0
        %559 = vmatprep.mubr.bf16.mxu0 0
        %560 = vmatmul.mubr.bf16.gmra.mrb[0].mxu0 %v525
        %v561 = vpop.f32.mrb[0].mxu0
        %v562 = vadd.f32 %v516, %v561
        %v563 = vpop.f32.mrb[0].mxu0
        %v564 = vpop.f32.mrb[0].mxu0
        %v565 = vpop.f32.mrb[0].mxu0
        %566 = vdwg.mxu0
        %v567 = vmul.f32 %v562, 0.5
        %v568 = vmul.f32 %v562, %v562
        %v569 = vmul.f32 %v568, %v562
        %v570 = vmul.f32 %v569, 0.044715
        %v571 = vadd.f32 %v562, %v570
        %v572 = vmul.f32 %v571, 0.7978846
        %v573 = vtanh.pop %v572
        %v574 = vadd.f32 %v573, 1.0
        %v575 = vmul.f32 %v567, %v574
        %v576 = vpack.c.bf16 %v506, %v506
        %v578 = vsel %vm523, %v576, 0
        %580 = vmatprep.subr.bf16.mxu0 0
        %581 = vmatpush1.bf16.msra.mxu0 %v521
        %582 = vmatprep.subr.bf16.mxu0 0
        %583 = vmatpush1.bf16.msra.mxu0 0
        %584 = vmatprep.subr.bf16.mxu0 0
        %585 = vmatpush1.bf16.msra.mxu0 0
        %586 = vmatprep.subr.bf16.mxu0 0
        %587 = vmatpush1.bf16.msra.mxu0 0
        %588 = vmatprep.subr.bf16.mxu0 0
        %589 = vmatpush1.bf16.msra.mxu0 0
        %590 = vmatprep.subr.bf16.mxu0 0
        %591 = vmatpush1.bf16.msra.mxu0 0
        %592 = vmatprep.subr.bf16.mxu0 0
        %593 = vmatpush1.bf16.msra.mxu0 0
        %594 = vmatprep.subr.bf16.mxu0 0
        %595 = vmatpush1.bf16.msra.mxu0 0
        %596 = vmatprep.subr.bf16.mxu0 0
        %597 = vmatpush1.bf16.msra.mxu0 0
        %598 = vmatprep.subr.bf16.mxu0 0
        %599 = vmatpush1.bf16.msra.mxu0 0
        %600 = vmatprep.subr.bf16.mxu0 0
        %601 = vmatpush1.bf16.msra.mxu0 0
        %602 = vmatprep.subr.bf16.mxu0 0
        %603 = vmatpush1.bf16.msra.mxu0 0
        %604 = vmatprep.subr.bf16.mxu0 0
        %605 = vmatpush1.bf16.msra.mxu0 0
        %606 = vmatprep.subr.bf16.mxu0 0
        %607 = vmatpush1.bf16.msra.mxu0 0
        %608 = vmatprep.subr.bf16.mxu0 0
        %609 = vmatpush1.bf16.msra.mxu0 0
        %610 = vmatprep.subr.bf16.mxu0 0
        %611 = vmatpush1.bf16.msra.mxu0 0
        %612 = vmatprep.mubr.bf16.mxu0 0
        %613 = vmatmul.mubr.bf16.gmra.mrb[0].mxu0 %v578
        %v614 = vpop.f32.mrb[0].mxu0
        %v615 = vadd.f32 %v508, %v614
        %v616 = vpop.f32.mrb[0].mxu0
        %v617 = vpop.f32.mrb[0].mxu0
        %v618 = vpop.f32.mrb[0].mxu0
        %619 = vdwg.mxu0
        %vm620 = vcmask 253952
        %v621 = vsel %vm620, %v615, 0.0
        %622 = vadd.xlane.f32.xlu0 %v621
        %v623 = vpop.xlane.xlu0 %622
        %v624 = vrcp.pop 32.0
        %v625 = vmul.f32 %v623, %v624
        %v626 = vsub.f32 %v615, %v625
        %v627 = vmul.f32 %v626, %v626
        %v628 = vsel %vm620, %v627, 0.0
        %629 = vadd.xlane.f32.xlu0 %v628
        %v630 = vpop.xlane.xlu0 %629
        %v631 = vmul.f32 %v630, %v624
        %v632 = vadd.f32 %v631, 1e-05
        %v633 = vrsqrt.pop %v632
        %v634 = vmul.f32 %v626, %v633
        %v636 = vrot.slane %v508, 1
        %v638 = vmul.f32 %v634, %v636
        %v639 = vrot.slane %v508, 2
        %v641 = vadd.f32 %v638, %v639
        %v642 = vmul.f32 %v641, 0.5
        %v643 = vmul.f32 %v641, %v641
        %v644 = vmul.f32 %v643, %v641
        %v645 = vmul.f32 %v644, 0.044715
        %v646 = vadd.f32 %v641, %v645
        %v647 = vmul.f32 %v646, 0.7978846
        %v648 = vtanh.pop %v647
        %v649 = vadd.f32 %v648, 1.0
        %v650 = vmul.f32 %v642, %v649
        %v651 = vpack.c.bf16 %v575, %v575
        %v652 = vld [vmem:[%s5] sm:$0xf]
        %v653 = vld [vmem:[%s5 + $0x4] sm:$0xf]
        %v654 = vld [vmem:[%s5 + $0x8] sm:$0xf]
        %v655 = vld [vmem:[%s5 + $0xc] sm:$0xf]
        %v660 = vunpack.c.l.b16 %v652
        %v661 = vunpack.c.l.b16 %v653
        %v662 = vunpack.c.l.b16 %v654
        %v663 = vunpack.c.l.b16 %v655
        %v664 = vpack.c.b16 %v661, %v660
        %v665 = vpack.c.b16 %v663, %v662
        %vm668 = vcmask 261120
        %v670 = vsel %vm668, %v651, 0
        %672 = vmatprep.subr.bf16.mxu0 0
        %673 = vmatpush1.bf16.msra.mxu0 %v664
        %674 = vmatprep.subr.bf16.mxu0 0
        %675 = vmatpush1.bf16.msra.mxu0 %v665
        %676 = vmatprep.subr.bf16.mxu0 0
        %677 = vmatpush1.bf16.msra.mxu0 0
        %678 = vmatprep.subr.bf16.mxu0 0
        %679 = vmatpush1.bf16.msra.mxu0 0
        %680 = vmatprep.subr.bf16.mxu0 0
        %681 = vmatpush1.bf16.msra.mxu0 0
        %682 = vmatprep.subr.bf16.mxu0 0
        %683 = vmatpush1.bf16.msra.mxu0 0
        %684 = vmatprep.subr.bf16.mxu0 0
        %685 = vmatpush1.bf16.msra.mxu0 0
        %686 = vmatprep.subr.bf16.mxu0 0
        %687 = vmatpush1.bf16.msra.mxu0 0
        %688 = vmatprep.subr.bf16.mxu0 0
        %689 = vmatpush1.bf16.msra.mxu0 0
        %690 = vmatprep.subr.bf16.mxu0 0
        %691 = vmatpush1.bf16.msra.mxu0 0
        %692 = vmatprep.subr.bf16.mxu0 0
        %693 = vmatpush1.bf16.msra.mxu0 0
        %694 = vmatprep.subr.bf16.mxu0 0
        %695 = vmatpush1.bf16.msra.mxu0 0
        %696 = vmatprep.subr.bf16.mxu0 0
        %697 = vmatpush1.bf16.msra.mxu0 0
        %698 = vmatprep.subr.bf16.mxu0 0
        %699 = vmatpush1.bf16.msra.mxu0 0
        %700 = vmatprep.subr.bf16.mxu0 0
        %701 = vmatpush1.bf16.msra.mxu0 0
        %702 = vmatprep.subr.bf16.mxu0 0
        %703 = vmatpush1.bf16.msra.mxu0 0
        %704 = vmatprep.mubr.bf16.mxu0 0
        %705 = vmatmul.mubr.bf16.gmra.mrb[0].mxu0 %v670
        %v706 = vpop.f32.mrb[0].mxu0
        %v707 = vadd.f32 0.0, %v706
        %v708 = vpop.f32.mrb[0].mxu0
        %v709 = vpop.f32.mrb[0].mxu0
        %v710 = vpop.f32.mrb[0].mxu0
        %711 = vdwg.mxu0
        %v712 = vlaneseq
        %v713 = vshrl.u32 %v712, 7
        %v714 = vsub.s32 4, %v713
        %v715 = vrot.slane %v508, %v714
        %v716 = vadd.f32 %v707, %v715
        %v717 = vlaneseq
        %v718 = vshrl.u32 %v717, 7
        %v719 = vsub.s32 5, %v718
        %v720 = vrot.slane %v508, %v719
        %722 = vrot.lane.b32.xlu0 %v720, 32
        %v723 = vpop.permute.xlu0 %722
        %v725 = vadd.f32 %v707, %v723
        %v726 = vpack.c.bf16 %v650, %v650
        %v727 = vld [vmem:[%s4] sm:$0xf]
        %v728 = vld [vmem:[%s4 + $0x4] sm:$0xf]
        %v729 = vld [vmem:[%s4 + $0x8] sm:$0xf]
        %v730 = vld [vmem:[%s4 + $0xc] sm:$0xf]
        %v735 = vunpack.c.l.b16 %v727
        %v736 = vunpack.c.l.b16 %v728
        %v737 = vunpack.c.l.b16 %v729
        %v738 = vunpack.c.l.b16 %v730
        %v739 = vpack.c.b16 %v736, %v735
        %v740 = vpack.c.b16 %v738, %v737
        %v743 = vrot.slane %v508, 3
        %v746 = vsel %vm668, %v726, 0
        %748 = vmatprep.subr.bf16.mxu0 0
        %749 = vmatpush1.bf16.msra.mxu0 %v739
        %750 = vmatprep.subr.bf16.mxu0 0
        %751 = vmatpush1.bf16.msra.mxu0 %v740
        %752 = vmatprep.subr.bf16.mxu0 0
        %753 = vmatpush1.bf16.msra.mxu0 0
        %754 = vmatprep.subr.bf16.mxu0 0
        %755 = vmatpush1.bf16.msra.mxu0 0
        %756 = vmatprep.subr.bf16.mxu0 0
        %757 = vmatpush1.bf16.msra.mxu0 0
        %758 = vmatprep.subr.bf16.mxu0 0
        %759 = vmatpush1.bf16.msra.mxu0 0
        %760 = vmatprep.subr.bf16.mxu0 0
        %761 = vmatpush1.bf16.msra.mxu0 0
        %762 = vmatprep.subr.bf16.mxu0 0
        %763 = vmatpush1.bf16.msra.mxu0 0
        %764 = vmatprep.subr.bf16.mxu0 0
        %765 = vmatpush1.bf16.msra.mxu0 0
        %766 = vmatprep.subr.bf16.mxu0 0
        %767 = vmatpush1.bf16.msra.mxu0 0
        %768 = vmatprep.subr.bf16.mxu0 0
        %769 = vmatpush1.bf16.msra.mxu0 0
        %770 = vmatprep.subr.bf16.mxu0 0
        %771 = vmatpush1.bf16.msra.mxu0 0
        %772 = vmatprep.subr.bf16.mxu0 0
        %773 = vmatpush1.bf16.msra.mxu0 0
        %774 = vmatprep.subr.bf16.mxu0 0
        %775 = vmatpush1.bf16.msra.mxu0 0
        %776 = vmatprep.subr.bf16.mxu0 0
        %777 = vmatpush1.bf16.msra.mxu0 0
        %778 = vmatprep.subr.bf16.mxu0 0
        %779 = vmatpush1.bf16.msra.mxu0 0
        %780 = vmatprep.mubr.bf16.mxu0 0
        %781 = vmatmul.mubr.bf16.gmra.mrb[0].mxu0 %v746
        %v782 = vpop.f32.mrb[0].mxu0
        %v783 = vadd.f32 %v743, %v782
        %v784 = vpop.f32.mrb[0].mxu0
        %v785 = vpop.f32.mrb[0].mxu0
        %v786 = vpop.f32.mrb[0].mxu0
        %787 = vdwg.mxu0
        %v788 = vmul.f32 %v783, 0.35355338
        %v789 = vld [vmem:[%s11] sm:$0xff]
        %v790 = vld [vmem:[%s11 + $0x8] sm:$0xff]
        %v791 = vld [vmem:[%s11 + $0x10] sm:$0xff]
        %v792 = vld [vmem:[%s11 + $0x18] sm:$0xff]
        %v793 = vlaneseq
        %v794 = vshrl.u32 %v793, 7
        %v795 = vsub.s32 0, %v794
        %v796 = vrot.slane %v788, %v795
        %v797 = vmul.f32 %v716, %v796
        %v799 = vsel %vm668, %v797, 0
        %801 = vmatprep.subr.mxu0 0.0
        %802 = vmatpush1.msra.mxu0 %v789
        %803 = vmatprep.subr.mxu0 0.0
        %804 = vmatpush1.msra.mxu0 %v790
        %805 = vmatprep.subr.mxu0 0.0
        %806 = vmatpush1.msra.mxu0 %v791
        %807 = vmatprep.subr.mxu0 0.0
        %808 = vmatpush1.msra.mxu0 %v792
        %809 = vmatprep.subr.mxu0 0.0
        %810 = vmatpush1.msra.mxu0 0.0
        %811 = vmatprep.subr.mxu0 0.0
        %812 = vmatpush1.msra.mxu0 0.0
        %813 = vmatprep.subr.mxu0 0.0
        %814 = vmatpush1.msra.mxu0 0.0
        %815 = vmatprep.subr.mxu0 0.0
        %816 = vmatpush1.msra.mxu0 0.0
        %817 = vmatprep.subr.mxu0 0.0
        %818 = vmatpush1.msra.mxu0 0.0
        %819 = vmatprep.subr.mxu0 0.0
        %820 = vmatpush1.msra.mxu0 0.0
        %821 = vmatprep.subr.mxu0 0.0
        %822 = vmatpush1.msra.mxu0 0.0
        %823 = vmatprep.subr.mxu0 0.0
        %824 = vmatpush1.msra.mxu0 0.0
        %825 = vmatprep.subr.mxu0 0.0
        %826 = vmatpush1.msra.mxu0 0.0
        %827 = vmatprep.subr.mxu0 0.0
        %828 = vmatpush1.msra.mxu0 0.0
        %829 = vmatprep.subr.mxu0 0.0
        %830 = vmatpush1.msra.mxu0 0.0
        %831 = vmatprep.subr.mxu0 0.0
        %832 = vmatpush1.msra.mxu0 0.0
        %833 = vmatprep.subr.mxu0 0.0
        %834 = vmatpush1.msra.mxu0 0.0
        %835 = vmatprep.subr.mxu0 0.0
        %836 = vmatpush1.msra.mxu0 0.0
        %837 = vmatprep.subr.mxu0 0.0
        %838 = vmatpush1.msra.mxu0 0.0
        %839 = vmatprep.subr.mxu0 0.0
        %840 = vmatpush1.msra.mxu0 0.0
        %841 = vmatprep.subr.mxu0 0.0
        %842 = vmatpush1.msra.mxu0 0.0
        %843 = vmatprep.subr.mxu0 0.0
        %844 = vmatpush1.msra.mxu0 0.0
        %845 = vmatprep.subr.mxu0 0.0
        %846 = vmatpush1.msra.mxu0 0.0
        %847 = vmatprep.subr.mxu0 0.0
        %848 = vmatpush1.msra.mxu0 0.0
        %849 = vmatprep.subr.mxu0 0.0
        %850 = vmatpush1.msra.mxu0 0.0
        %851 = vmatprep.subr.mxu0 0.0
        %852 = vmatpush1.msra.mxu0 0.0
        %853 = vmatprep.subr.mxu0 0.0
        %854 = vmatpush1.msra.mxu0 0.0
        %855 = vmatprep.subr.mxu0 0.0
        %856 = vmatpush1.msra.mxu0 0.0
        %857 = vmatprep.subr.mxu0 0.0
        %858 = vmatpush1.msra.mxu0 0.0
        %859 = vmatprep.subr.mxu0 0.0
        %860 = vmatpush1.msra.mxu0 0.0
        %861 = vmatprep.subr.mxu0 0.0
        %862 = vmatpush1.msra.mxu0 0.0
        %863 = vmatprep.subr.mxu0 0.0
        %864 = vmatpush1.msra.mxu0 0.0
        %865 = vmatprep.mubr.f32.mxu0 0.0
        %866 = vmatmul.mubr.f32.gmra.mrb[0].mxu0 %v799
        %v867 = vpop.f32.mrb[0].mxu0
        %v868 = vadd.f32 0.0, %v867
        %v869 = vpop.f32.mrb[0].mxu0
        %870 = vdwg.mxu0
        %vm871 = vcmp.gt.f32.partialorder %v507, 0.5
        %v872 = vsel %vm871, 1, 0
        %873 = vset.pattern.permute.xlu0 0
        %874 = vperm.xlu0 %873, %v872
        %v875 = vpop.permute.xlu0 %874
        %vm876 = vcmp.eq.s32.totalorder %v875, 1
        %v877 = vsel %vm876, -1e+30, %v868
        %vm878 = vcmask 31744
        %v879 = vsel %vm878, %v877, -inf
        %v880 = vrot.slane %v879, 4
        %v881 = vmax.f32 %v879, %v880
        %v882 = vrot.slane %v881, 2
        %v883 = vmax.f32 %v881, %v882
        %v884 = vrot.slane %v883, 1
        %v885 = vmax.f32 %v883, %v884
        %v886 = vsub.f32 %v877, %v885
        %v887 = vmul.f32 %v886, 1.442695
        %v888 = vpow.pop %v887
        %v889 = vsel %vm878, %v888, 0.0
        %v890 = vrot.slane %v889, 4
        %v891 = vadd.f32 %v889, %v890
        %v892 = vrot.slane %v891, 2
        %v893 = vadd.f32 %v891, %v892
        %v894 = vrot.slane %v893, 1
        %v895 = vadd.f32 %v893, %v894
        %v896 = vrcp.pop %v895
        %v897 = vmul.f32 %v888, %v896
        %v899 = vsel %vm878, %v897, 0
        %v902 = vsel %vm878, %v789, 0
        %v905 = vsel %vm878, %v790, 0
        %v908 = vsel %vm878, %v791, 0
        %v911 = vsel %vm878, %v792, 0
        %913 = vmatprep.subr.mxu0 0.0
        %914 = vmatpush1.xpose.msra.mxu0 %v902
        %915 = vmatprep.subr.mxu0 0.0
        %916 = vmatpush1.xpose.msra.mxu0 %v905
        %917 = vmatprep.subr.mxu0 0.0
        %918 = vmatpush1.xpose.msra.mxu0 %v908
        %919 = vmatprep.subr.mxu0 0.0
        %920 = vmatpush1.xpose.msra.mxu0 %v911
        %921 = vmatprep.subr.mxu0 0.0
        %922 = vmatpush1.xpose.msra.mxu0 0.0
        %923 = vmatprep.subr.mxu0 0.0
        %924 = vmatpush1.xpose.msra.mxu0 0.0
        %925 = vmatprep.subr.mxu0 0.0
        %926 = vmatpush1.xpose.msra.mxu0 0.0
        %927 = vmatprep.subr.mxu0 0.0
        %928 = vmatpush1.xpose.msra.mxu0 0.0
        %929 = vmatprep.subr.mxu0 0.0
        %930 = vmatpush1.xpose.msra.mxu0 0.0
        %931 = vmatprep.subr.mxu0 0.0
        %932 = vmatpush1.xpose.msra.mxu0 0.0
        %933 = vmatprep.subr.mxu0 0.0
        %934 = vmatpush1.xpose.msra.mxu0 0.0
        %935 = vmatprep.subr.mxu0 0.0
        %936 = vmatpush1.xpose.msra.mxu0 0.0
        %937 = vmatprep.subr.mxu0 0.0
        %938 = vmatpush1.xpose.msra.mxu0 0.0
        %939 = vmatprep.subr.mxu0 0.0
        %940 = vmatpush1.xpose.msra.mxu0 0.0
        %941 = vmatprep.subr.mxu0 0.0
        %942 = vmatpush1.xpose.msra.mxu0 0.0
        %943 = vmatprep.subr.mxu0 0.0
        %944 = vmatpush1.xpose.msra.mxu0 0.0
        %945 = vmatprep.subr.mxu0 0.0
        %946 = vmatpush1.xpose.msra.mxu0 0.0
        %947 = vmatprep.subr.mxu0 0.0
        %948 = vmatpush1.xpose.msra.mxu0 0.0
        %949 = vmatprep.subr.mxu0 0.0
        %950 = vmatpush1.xpose.msra.mxu0 0.0
        %951 = vmatprep.subr.mxu0 0.0
        %952 = vmatpush1.xpose.msra.mxu0 0.0
        %953 = vmatprep.subr.mxu0 0.0
        %954 = vmatpush1.xpose.msra.mxu0 0.0
        %955 = vmatprep.subr.mxu0 0.0
        %956 = vmatpush1.xpose.msra.mxu0 0.0
        %957 = vmatprep.subr.mxu0 0.0
        %958 = vmatpush1.xpose.msra.mxu0 0.0
        %959 = vmatprep.subr.mxu0 0.0
        %960 = vmatpush1.xpose.msra.mxu0 0.0
        %961 = vmatprep.subr.mxu0 0.0
        %962 = vmatpush1.xpose.msra.mxu0 0.0
        %963 = vmatprep.subr.mxu0 0.0
        %964 = vmatpush1.xpose.msra.mxu0 0.0
        %965 = vmatprep.subr.mxu0 0.0
        %966 = vmatpush1.xpose.msra.mxu0 0.0
        %967 = vmatprep.subr.mxu0 0.0
        %968 = vmatpush1.xpose.msra.mxu0 0.0
        %969 = vmatprep.subr.mxu0 0.0
        %970 = vmatpush1.xpose.msra.mxu0 0.0
        %971 = vmatprep.subr.mxu0 0.0
        %972 = vmatpush1.xpose.msra.mxu0 0.0
        %973 = vmatprep.subr.mxu0 0.0
        %974 = vmatpush1.xpose.msra.mxu0 0.0
        %975 = vmatprep.subr.mxu0 0.0
        %976 = vmatpush1.xpose.msra.mxu0 0.0
        %977 = vmatprep.mubr.f32.mxu0 0.0
        %978 = vmatmul.mubr.f32.gmra.mrb[0].mxu0 %v899
        %v979 = vpop.f32.mrb[0].mxu0
        %v980 = vadd.f32 0.0, %v979
        %v981 = vpop.f32.mrb[0].mxu0
        %982 = vdwg.mxu0
        %984 = vrot.lane.b32.xlu0 %v725, 96
        %v985 = vpop.permute.xlu0 %984
        %v987 = vmul.f32 %v980, %v985
        %v988 = vsel %vm668, %v987, 0.0
        %v989 = vrot.slane %v988, 4
        %v990 = vadd.f32 %v988, %v989
        %v991 = vrot.slane %v990, 2
        %v992 = vadd.f32 %v990, %v991
        %v993 = vrot.slane %v992, 1
        %v994 = vadd.f32 %v992, %v993
        %v995 = vpack.c.bf16 %v994, %v994
        %v996 = vld [vmem:[%s6] sm:$0xf]
        %v997 = vld [vmem:[%s6 + $0x4] sm:$0xf]
        %v998 = vld [vmem:[%s6 + $0x8] sm:$0xf]
        %v999 = vld [vmem:[%s6 + $0xc] sm:$0xf]
        %v1004 = vunpack.c.l.b16 %v996
        %v1005 = vunpack.c.l.b16 %v997
        %v1006 = vunpack.c.l.b16 %v998
        %v1007 = vunpack.c.l.b16 %v999
        %v1008 = vpack.c.b16 %v1005, %v1004
        %v1009 = vpack.c.b16 %v1007, %v1006
        %v1012 = vrot.slane %v508, 6
        %v1015 = vsel %vm668, %v995, 0
        %1017 = vmatprep.subr.bf16.mxu0 0
        %1018 = vmatpush1.bf16.msra.mxu0 %v1008
        %1019 = vmatprep.subr.bf16.mxu0 0
        %1020 = vmatpush1.bf16.msra.mxu0 %v1009
        %1021 = vmatprep.subr.bf16.mxu0 0
        %1022 = vmatpush1.bf16.msra.mxu0 0
        %1023 = vmatprep.subr.bf16.mxu0 0
        %1024 = vmatpush1.bf16.msra.mxu0 0
        %1025 = vmatprep.subr.bf16.mxu0 0
        %1026 = vmatpush1.bf16.msra.mxu0 0
        %1027 = vmatprep.subr.bf16.mxu0 0
        %1028 = vmatpush1.bf16.msra.mxu0 0
        %1029 = vmatprep.subr.bf16.mxu0 0
        %1030 = vmatpush1.bf16.msra.mxu0 0
        %1031 = vmatprep.subr.bf16.mxu0 0
        %1032 = vmatpush1.bf16.msra.mxu0 0
        %1033 = vmatprep.subr.bf16.mxu0 0
        %1034 = vmatpush1.bf16.msra.mxu0 0
        %1035 = vmatprep.subr.bf16.mxu0 0
        %1036 = vmatpush1.bf16.msra.mxu0 0
        %1037 = vmatprep.subr.bf16.mxu0 0
        %1038 = vmatpush1.bf16.msra.mxu0 0
        %1039 = vmatprep.subr.bf16.mxu0 0
        %1040 = vmatpush1.bf16.msra.mxu0 0
        %1041 = vmatprep.subr.bf16.mxu0 0
        %1042 = vmatpush1.bf16.msra.mxu0 0
        %1043 = vmatprep.subr.bf16.mxu0 0
        %1044 = vmatpush1.bf16.msra.mxu0 0
        %1045 = vmatprep.subr.bf16.mxu0 0
        %1046 = vmatpush1.bf16.msra.mxu0 0
        %1047 = vmatprep.subr.bf16.mxu0 0
        %1048 = vmatpush1.bf16.msra.mxu0 0
        %1049 = vmatprep.mubr.bf16.mxu0 0
        %1050 = vmatmul.mubr.bf16.gmra.mrb[0].mxu0 %v1015
        %v1051 = vpop.f32.mrb[0].mxu0
        %v1052 = vadd.f32 %v1012, %v1051
        %v1053 = vpop.f32.mrb[0].mxu0
        %v1054 = vpop.f32.mrb[0].mxu0
        %v1055 = vpop.f32.mrb[0].mxu0
        %1056 = vdwg.mxu0
        %vm1057 = vcmask 7168
        %v1058 = vsel %vm1057, %v507, 0.0
        %v1059 = vrot.slane %v1058, 4
        %v1060 = vadd.f32 %v1058, %v1059
        %v1061 = vrot.slane %v1060, 2
        %v1062 = vadd.f32 %v1060, %v1061
        %v1063 = vrot.slane %v1062, 1
        %v1064 = vadd.f32 %v1062, %v1063
        %v1065 = vmul.f32 %v1064, 0.014285714
        %v1066 = vpack.c.bf16 %v1052, %v1052
        %v1067 = vld [vmem:[%s7] sm:$0xf]
        %v1068 = vld [vmem:[%s7 + $0x4] sm:$0xf]
        %v1069 = vld [vmem:[%s7 + $0x8] sm:$0xf]
        %v1070 = vld [vmem:[%s7 + $0xc] sm:$0xf]
        %1072 = vset.pattern.permute.xlu0 0
        %1073 = vperm.xlu0 %1072, %v1065
        %v1074 = vpop.permute.xlu0 %1073
        %v1076 = vmul.f32 %v1074, %v509
        %v1081 = vunpack.c.l.b16 %v1067
        %v1082 = vunpack.c.l.b16 %v1068
        %v1083 = vunpack.c.l.b16 %v1069
        %v1084 = vunpack.c.l.b16 %v1070
        %v1085 = vpack.c.b16 %v1082, %v1081
        %v1086 = vpack.c.b16 %v1084, %v1083
        %v1090 = vsel %vm668, %v1066, 0
        %1092 = vmatprep.subr.bf16.mxu0 0
        %1093 = vmatpush1.bf16.msra.mxu0 %v1085
        %1094 = vmatprep.subr.bf16.mxu0 0
        %1095 = vmatpush1.bf16.msra.mxu0 %v1086
        %1096 = vmatprep.subr.bf16.mxu0 0
        %1097 = vmatpush1.bf16.msra.mxu0 0
        %1098 = vmatprep.subr.bf16.mxu0 0
        %1099 = vmatpush1.bf16.msra.mxu0 0
        %1100 = vmatprep.subr.bf16.mxu0 0
        %1101 = vmatpush1.bf16.msra.mxu0 0
        %1102 = vmatprep.subr.bf16.mxu0 0
        %1103 = vmatpush1.bf16.msra.mxu0 0
        %1104 = vmatprep.subr.bf16.mxu0 0
        %1105 = vmatpush1.bf16.msra.mxu0 0
        %1106 = vmatprep.subr.bf16.mxu0 0
        %1107 = vmatpush1.bf16.msra.mxu0 0
        %1108 = vmatprep.subr.bf16.mxu0 0
        %1109 = vmatpush1.bf16.msra.mxu0 0
        %1110 = vmatprep.subr.bf16.mxu0 0
        %1111 = vmatpush1.bf16.msra.mxu0 0
        %1112 = vmatprep.subr.bf16.mxu0 0
        %1113 = vmatpush1.bf16.msra.mxu0 0
        %1114 = vmatprep.subr.bf16.mxu0 0
        %1115 = vmatpush1.bf16.msra.mxu0 0
        %1116 = vmatprep.subr.bf16.mxu0 0
        %1117 = vmatpush1.bf16.msra.mxu0 0
        %1118 = vmatprep.subr.bf16.mxu0 0
        %1119 = vmatpush1.bf16.msra.mxu0 0
        %1120 = vmatprep.subr.bf16.mxu0 0
        %1121 = vmatpush1.bf16.msra.mxu0 0
        %1122 = vmatprep.subr.bf16.mxu0 0
        %1123 = vmatpush1.bf16.msra.mxu0 0
        %1124 = vmatprep.mubr.bf16.mxu0 0
        %1125 = vmatmul.mubr.bf16.gmra.mrb[0].mxu0 %v1090
        %v1126 = vpop.f32.mrb[0].mxu0
        %v1127 = vadd.f32 %v1076, %v1126
        %v1128 = vpop.f32.mrb[0].mxu0
        %v1129 = vpop.f32.mrb[0].mxu0
        %v1130 = vpop.f32.mrb[0].mxu0
        %1131 = vdwg.mxu0
        %v1132 = vrot.slane %v508, 7
        %v1134 = vadd.f32 %v1127, %v1132
        %v1135 = vld [vmem:[%s8] sm:$0xf]
        %v1136 = vld [vmem:[%s8 + $0x4] sm:$0xf]
        %v1137 = vld [vmem:[%s8 + $0x8] sm:$0xf]
        %v1138 = vld [vmem:[%s8 + $0xc] sm:$0xf]
        %v1143 = vunpack.c.l.b16 %v1135
        %v1144 = vunpack.c.l.b16 %v1136
        %v1145 = vunpack.c.l.b16 %v1137
        %v1146 = vunpack.c.l.b16 %v1138
        %v1147 = vpack.c.b16 %v1144, %v1143
        %v1148 = vpack.c.b16 %v1146, %v1145
        %1151 = vmatprep.subr.bf16.mxu0 0
        %1152 = vmatpush1.bf16.msra.mxu0 %v1147
        %1153 = vmatprep.subr.bf16.mxu0 0
        %1154 = vmatpush1.bf16.msra.mxu0 %v1148
        %1155 = vmatprep.subr.bf16.mxu0 0
        %1156 = vmatpush1.bf16.msra.mxu0 0
        %1157 = vmatprep.subr.bf16.mxu0 0
        %1158 = vmatpush1.bf16.msra.mxu0 0
        %1159 = vmatprep.subr.bf16.mxu0 0
        %1160 = vmatpush1.bf16.msra.mxu0 0
        %1161 = vmatprep.subr.bf16.mxu0 0
        %1162 = vmatpush1.bf16.msra.mxu0 0
        %1163 = vmatprep.subr.bf16.mxu0 0
        %1164 = vmatpush1.bf16.msra.mxu0 0
        %1165 = vmatprep.subr.bf16.mxu0 0
        %1166 = vmatpush1.bf16.msra.mxu0 0
        %1167 = vmatprep.subr.bf16.mxu0 0
        %1168 = vmatpush1.bf16.msra.mxu0 0
        %1169 = vmatprep.subr.bf16.mxu0 0
        %1170 = vmatpush1.bf16.msra.mxu0 0
        %1171 = vmatprep.subr.bf16.mxu0 0
        %1172 = vmatpush1.bf16.msra.mxu0 0
        %1173 = vmatprep.subr.bf16.mxu0 0
        %1174 = vmatpush1.bf16.msra.mxu0 0
        %1175 = vmatprep.subr.bf16.mxu0 0
        %1176 = vmatpush1.bf16.msra.mxu0 0
        %1177 = vmatprep.subr.bf16.mxu0 0
        %1178 = vmatpush1.bf16.msra.mxu0 0
        %1179 = vmatprep.subr.bf16.mxu0 0
        %1180 = vmatpush1.bf16.msra.mxu0 0
        %1181 = vmatprep.subr.bf16.mxu0 0
        %1182 = vmatpush1.bf16.msra.mxu0 0
        %1183 = vmatprep.mubr.bf16.mxu0 0
        %1184 = vmatmul.mubr.bf16.gmra.mrb[0].mxu0 %v670
        %v1185 = vpop.f32.mrb[0].mxu0
        %v1186 = vadd.f32 0.0, %v1185
        %v1187 = vpop.f32.mrb[0].mxu0
        %v1188 = vpop.f32.mrb[0].mxu0
        %v1189 = vpop.f32.mrb[0].mxu0
        %1190 = vdwg.mxu0
        %v1191 = vpack.c.bf16 %v1134, %v1134
        %v1192 = vld [vmem:[%s9] sm:$0xf]
        %v1193 = vld [vmem:[%s9 + $0x4] sm:$0xf]
        %v1196 = vunpack.c.l.b16 %v1192
        %v1197 = vunpack.c.l.b16 %v1193
        %v1198 = vpack.c.b16 %v1197, %v1196
        %v1201 = vsel %vm523, %v1191, 0
        %1203 = vmatprep.subr.bf16.mxu0 0
        %1204 = vmatpush1.bf16.msra.mxu0 %v1198
        %1205 = vmatprep.subr.bf16.mxu0 0
        %1206 = vmatpush1.bf16.msra.mxu0 0
        %1207 = vmatprep.subr.bf16.mxu0 0
        %1208 = vmatpush1.bf16.msra.mxu0 0
        %1209 = vmatprep.subr.bf16.mxu0 0
        %1210 = vmatpush1.bf16.msra.mxu0 0
        %1211 = vmatprep.subr.bf16.mxu0 0
        %1212 = vmatpush1.bf16.msra.mxu0 0
        %1213 = vmatprep.subr.bf16.mxu0 0
        %1214 = vmatpush1.bf16.msra.mxu0 0
        %1215 = vmatprep.subr.bf16.mxu0 0
        %1216 = vmatpush1.bf16.msra.mxu0 0
        %1217 = vmatprep.subr.bf16.mxu0 0
        %1218 = vmatpush1.bf16.msra.mxu0 0
        %1219 = vmatprep.subr.bf16.mxu0 0
        %1220 = vmatpush1.bf16.msra.mxu0 0
        %1221 = vmatprep.subr.bf16.mxu0 0
        %1222 = vmatpush1.bf16.msra.mxu0 0
        %1223 = vmatprep.subr.bf16.mxu0 0
        %1224 = vmatpush1.bf16.msra.mxu0 0
        %1225 = vmatprep.subr.bf16.mxu0 0
        %1226 = vmatpush1.bf16.msra.mxu0 0
        %1227 = vmatprep.subr.bf16.mxu0 0
        %1228 = vmatpush1.bf16.msra.mxu0 0
        %1229 = vmatprep.subr.bf16.mxu0 0
        %1230 = vmatpush1.bf16.msra.mxu0 0
        %1231 = vmatprep.subr.bf16.mxu0 0
        %1232 = vmatpush1.bf16.msra.mxu0 0
        %1233 = vmatprep.subr.bf16.mxu0 0
        %1234 = vmatpush1.bf16.msra.mxu0 0
        %1235 = vmatprep.mubr.bf16.mxu0 0
        %1236 = vmatmul.mubr.bf16.gmra.mrb[0].mxu0 %v1201
        %v1237 = vpop.f32.mrb[0].mxu0
        %v1238 = vadd.f32 0.0, %v1237
        %v1239 = vpop.f32.mrb[0].mxu0
        %v1240 = vpop.f32.mrb[0].mxu0
        %v1241 = vpop.f32.mrb[0].mxu0
        %1242 = vdwg.mxu0
        %v1243 = vlaneseq
        %v1244 = vshrl.u32 %v1243, 7
        %v1245 = vsub.s32 0, %v1244
        %v1246 = vrot.slane %v1238, %v1245
        %v1247 = vadd.f32 %v1186, %v1246
        %v1248 = vlaneseq
        %v1249 = vshrl.u32 %v1248, 7
        %v1250 = vsub.s32 1, %v1249
        %v1251 = vrot.slane %v509, %v1250
        %v1252 = vadd.f32 %v1247, %v1251
        %v1253 = vmul.f32 %v1252, 0.5
        %v1254 = vmul.f32 %v1252, %v1252
        %v1255 = vmul.f32 %v1254, %v1252
        %v1256 = vmul.f32 %v1255, 0.044715
        %v1257 = vadd.f32 %v1252, %v1256
        %v1258 = vmul.f32 %v1257, 0.7978846
        %v1259 = vtanh.pop %v1258
        %v1260 = vadd.f32 %v1259, 1.0
        %v1261 = vmul.f32 %v1253, %v1260
        %v1262 = vpack.c.bf16 %v1261, %v1261
        %v1263 = vld [vmem:[%s10] sm:$0xf]
        %v1264 = vld [vmem:[%s10 + $0x4] sm:$0xf]
        %v1265 = vlaneseq
        %v1266 = vshrl.u32 %v1265, 7
        %v1267 = vsub.s32 2, %v1266
        %v1268 = vrot.slane %v509, %v1267
        %v1271 = vunpack.c.l.b16 %v1263
        %v1272 = vunpack.c.l.b16 %v1264
        %v1273 = vpack.c.b16 %v1272, %v1271
        %v1276 = vsel %vm523, %v1262, 0
        %1278 = vmatprep.subr.bf16.mxu0 0
        %1279 = vmatpush1.bf16.msra.mxu0 %v1273
        %1280 = vmatprep.subr.bf16.mxu0 0
        %1281 = vmatpush1.bf16.msra.mxu0 0
        %1282 = vmatprep.subr.bf16.mxu0 0
        %1283 = vmatpush1.bf16.msra.mxu0 0
        %1284 = vmatprep.subr.bf16.mxu0 0
        %1285 = vmatpush1.bf16.msra.mxu0 0
        %1286 = vmatprep.subr.bf16.mxu0 0
        %1287 = vmatpush1.bf16.msra.mxu0 0
        %1288 = vmatprep.subr.bf16.mxu0 0
        %1289 = vmatpush1.bf16.msra.mxu0 0
        %1290 = vmatprep.subr.bf16.mxu0 0
        %1291 = vmatpush1.bf16.msra.mxu0 0
        %1292 = vmatprep.subr.bf16.mxu0 0
        %1293 = vmatpush1.bf16.msra.mxu0 0
        %1294 = vmatprep.subr.bf16.mxu0 0
        %1295 = vmatpush1.bf16.msra.mxu0 0
        %1296 = vmatprep.subr.bf16.mxu0 0
        %1297 = vmatpush1.bf16.msra.mxu0 0
        %1298 = vmatprep.subr.bf16.mxu0 0
        %1299 = vmatpush1.bf16.msra.mxu0 0
        %1300 = vmatprep.subr.bf16.mxu0 0
        %1301 = vmatpush1.bf16.msra.mxu0 0
        %1302 = vmatprep.subr.bf16.mxu0 0
        %1303 = vmatpush1.bf16.msra.mxu0 0
        %1304 = vmatprep.subr.bf16.mxu0 0
        %1305 = vmatpush1.bf16.msra.mxu0 0
        %1306 = vmatprep.subr.bf16.mxu0 0
        %1307 = vmatpush1.bf16.msra.mxu0 0
        %1308 = vmatprep.subr.bf16.mxu0 0
        %1309 = vmatpush1.bf16.msra.mxu0 0
        %1310 = vmatprep.mubr.bf16.mxu0 0
        %1311 = vmatmul.mubr.bf16.gmra.mrb[0].mxu0 %v1276
        %v1312 = vpop.f32.mrb[0].mxu0
        %v1313 = vadd.f32 %v1268, %v1312
        %v1314 = vpop.f32.mrb[0].mxu0
        %v1315 = vpop.f32.mrb[0].mxu0
        %v1316 = vpop.f32.mrb[0].mxu0
        %1317 = vdwg.mxu0
        %v1318 = vadd.f32 %v1313, %v505
        %v1319 = vmul.f32 %v1318, 0.5
        %v1320 = vmul.f32 %v1318, %v1318
        %v1321 = vmul.f32 %v1320, %v1318
        %v1322 = vmul.f32 %v1321, 0.044715
        %v1323 = vadd.f32 %v1318, %v1322
        %v1324 = vmul.f32 %v1323, 0.7978846
        %v1325 = vtanh.pop %v1324
        %v1326 = vadd.f32 %v1325, 1.0
        %v1327 = vmul.f32 %v1319, %v1326
        %vm1328 = vcmask 122880
        %1329 = vst.msk [vmem:[%s492] sm:$0x1] %vm1328, %v1134
        %v1330 = vsel %vm523, %v1327, 0.0
        %1331 = vst [vmem:[%s486] sm:$0xff] %v1330
        %s1332 = sand.u32 %s328, 1
        %s1333 = scalar_lea.sflag [#allocation3], %s1332
        %s1334 = sand.u32 %s328, 1
        %s1335 = smul.addr %s1334, 8
        %s1336 = scalar_lea.vmem [#allocation2], %s1335
        %s1337 = sand.u32 %s354, 1
        %s1338 = scalar_lea.sflag [#allocation5], %s1337
        %s1339 = sand.u32 %s354, 1
        %s1340 = scalar_lea.vmem [#allocation4], %s1339
        // Predicated region
        $region73: #{block_gen_forward.1} parent=71 // pred_check
          %p1341 = pneg %p338
        $region74: #{block_gen_forward.1} parent=71 // pred_check_branch
          %1343 = sbr.rel (%p1341) target = $region76
        $region75: #{block_gen_forward.1} parent=71 // pred_region
          %s1345 = ssub.s32 128, 128
          %1346 = vsyncadd %s1333, %s1345
          %s1347 = smul.addr %s32, 128
          %s1348 = scalar_lea.hbm %s13, %s1347
          %s1350 = sshll.u32 %s1336, 4
          %s1351 = int_to_ptr.vmem [resolvable:$true] %s1350
          %1353 = dma.vmem_to_hbm [thread:$0]  %s1351, 128, %s1348, %s1333
        $region76: #{block_gen_forward.1} parent=71 // pred_fallthru
          _
        // Predicated region
        $region77: #{block_gen_forward.1} parent=71 // pred_check
          %p1354 = pneg %p364
        $region78: #{block_gen_forward.1} parent=71 // pred_check_branch
          %1356 = sbr.rel (%p1354) target = $region80
        $region79: #{block_gen_forward.1} parent=71 // pred_region
          %s1358 = ssub.s32 16, 16
          %1359 = vsyncadd %s1338, %s1358
          %s1360 = smul.addr %s32, 16
          %s1361 = scalar_lea.hbm %s14, %s1360
          %s1363 = sshll.u32 %s1340, 4
          %s1364 = int_to_ptr.vmem [resolvable:$true] %s1363
          %1366 = dma.vmem_to_hbm [thread:$0]  %s1364, 16, %s1361, %s1338
        $region80: #{block_gen_forward.1} parent=71 // pred_fallthru
          _
      $region72: #{block_gen_forward.1} parent=5 // pred_fallthru
        _
      %p1367 = scmp.le.s32.totalorder 2, %s27
      // Predicated region
      $region81: #{block_gen_forward.1} parent=5 // pred_check
        %p1368 = pneg %p1367
      $region82: #{block_gen_forward.1} parent=5 // pred_check_branch
        %1370 = sbr.rel (%p1368) target = $region84
      $region83: #{block_gen_forward.1} parent=5 // pred_region
        %s1371 = ssub.s32 %s27, 2
        // Predicated region
        $region85: #{block_gen_forward.1} parent=83 // pred_check
          %p1372 = pneg %p344
        $region86: #{block_gen_forward.1} parent=83 // pred_check_branch
          %1374 = sbr.rel (%p1372) target = $region88
        $region87: #{block_gen_forward.1} parent=83 // pred_region
          %s1375 = sand.u32 %s329, 1
          %s1376 = scalar_lea.sflag [#allocation3], %s1375
          %s1377 = sand.u32 %s329, 1
          %s1378 = smul.addr %s1377, 8
          %s1379 = scalar_lea.vmem [#allocation2], %s1378
          %1380 = dma.done %s1376, 128
        $region88: #{block_gen_forward.1} parent=83 // pred_fallthru
          _
        // Predicated region
        $region89: #{block_gen_forward.1} parent=83 // pred_check
          %p1381 = pneg %p370
        $region90: #{block_gen_forward.1} parent=83 // pred_check_branch
          %1383 = sbr.rel (%p1381) target = $region92
        $region91: #{block_gen_forward.1} parent=83 // pred_region
          %s1384 = sand.u32 %s355, 1
          %s1385 = scalar_lea.sflag [#allocation5], %s1384
          %s1386 = sand.u32 %s355, 1
          %s1387 = scalar_lea.vmem [#allocation4], %s1386
          %1388 = dma.done %s1385, 16
        $region92: #{block_gen_forward.1} parent=83 // pred_fallthru
          _
      $region84: #{block_gen_forward.1} parent=5 // pred_fallthru
        _
    $region6: #{block_gen_forward.1} parent=1 // loop_footer
      %s31 = sadd.s32 1, %s27
    $region7: #{block_gen_forward.1} parent=1 // loop_footer_branch
      %26 = sbr.rel target = $region3
    $region8: #{block_gen_forward.1} parent=1 // loop_exit
      _
    %1389 = vsyncpa [#allocation3], 1
    %s1390 = scalar_lea.sflag [#allocation3], 1
    %1391 = vsyncpa %s1390, 1
    %1392 = vsyncpa [#allocation5], 1
    %s1393 = scalar_lea.sflag [#allocation5], 1
    %1394 = vsyncpa %s1393, 1

</llo_original>
